<compile_context>
chip_gen: v6e
topology: v6e:2x2x1
jax: 0.10.0
libtpu: 0.0.40
codegen_flags: <defaults>
</compile_context>

<pallas_src>
import functools

import jax
import jax.numpy as jnp
from jax.experimental import pallas as pl
from jax.experimental.pallas import tpu as pltpu


def _erf(x):
    # Abramowitz & Stegun 7.1.26 rational approximation (|err| < 1.5e-7).
    a1, a2, a3, a4, a5 = 0.254829592, -0.284496736, 1.421413741, -1.453152027, 1.061405429
    pconst = 0.3275911
    sgn = jnp.where(x >= 0.0, 1.0, -1.0)
    ax = jnp.abs(x)
    t = 1.0 / (1.0 + pconst * ax)
    poly = ((((a5 * t + a4) * t + a3) * t + a2) * t + a1) * t
    return sgn * (1.0 - poly * jnp.exp(-ax * ax))


# ----------------------------------------------------------------------------
# Kernel 1: fused  stem(1x1 conv + BN + SiLU)  +  DCNv3.input_proj.
#   One read of the input rows, two outputs (s and x_proj).  BN folded into the
#   stem weight in the wrapper.
# ----------------------------------------------------------------------------
def _stem_proj_kernel(x_ref, ws_ref, sh_ref, wip_ref, bip_ref, s_ref, xp_ref):
    y = jnp.dot(x_ref[...], ws_ref[...], preferred_element_type=jnp.float32) + sh_ref[...]
    s = y * (1.0 / (1.0 + jnp.exp(-y)))                     # SiLU
    s_ref[...] = s
    xp_ref[...] = (jnp.dot(s, wip_ref[...], preferred_element_type=jnp.float32)
                   + bip_ref[...])


def stem_input_proj(x_rows, ws, sh, wip, bip, block_rows):
    R, cin = x_rows.shape
    cout = ws.shape[1]
    assert R % block_rows == 0
    return pl.pallas_call(
        _stem_proj_kernel,
        out_shape=(jax.ShapeDtypeStruct((R, cout), jnp.float32),
                   jax.ShapeDtypeStruct((R, cout), jnp.float32)),
        grid=(R // block_rows,),
        in_specs=[
            pl.BlockSpec((block_rows, cin), lambda i: (i, 0)),
            pl.BlockSpec((cin, cout), lambda i: (0, 0)),
            pl.BlockSpec((1, cout), lambda i: (0, 0)),
            pl.BlockSpec((cout, cout), lambda i: (0, 0)),
            pl.BlockSpec((1, cout), lambda i: (0, 0)),
        ],
        out_specs=(pl.BlockSpec((block_rows, cout), lambda i: (i, 0)),
                   pl.BlockSpec((block_rows, cout), lambda i: (i, 0))),
        compiler_params=pltpu.CompilerParams(dimension_semantics=("parallel",)),
    )(x_rows, ws, sh.reshape(1, cout), wip, bip.reshape(1, cout))


# ----------------------------------------------------------------------------
# Kernel 2: fused depthwise KxK conv + LayerNorm + GELU + offset/mask Linears.
#   One grid step per batch element; the K*K taps are shifted reads of the
#   padded image held in VMEM (no im2col in HBM), and the x1 intermediate never
#   leaves VMEM.
# ----------------------------------------------------------------------------
def _dw_off_mask_kernel(sp_ref, wdw_ref, bdw_ref, lng_ref, lnb_ref,
                        woff_ref, boff_ref, wmsk_ref, bmsk_ref,
                        off_ref, ml_ref, *, H, W, K, ln_eps):
    sp = sp_ref[0]                                  # (Hp, Wp, C) padded activations
    wdw = wdw_ref[...]                              # (K, K, C)
    acc = None
    for i in range(K):                              # depthwise taps: shifted VMEM reads
        for j in range(K):
            tap = sp[i:i + H, j:j + W, :] * wdw[i:i + 1, j:j + 1, :]
            acc = tap if acc is None else acc + tap
    acc = acc + bdw_ref[...]
    mu = jnp.mean(acc, axis=-1, keepdims=True)      # LayerNorm over channels
    var = jnp.mean(jnp.square(acc - mu), axis=-1, keepdims=True)
    y = (acc - mu) * jax.lax.rsqrt(var + ln_eps)
    y = y * lng_ref[...] + lnb_ref[...]
    y = 0.5 * y * (1.0 + _erf(y * 0.7071067811865476))   # exact GELU
    x1 = y.reshape(H * W, y.shape[-1])
    off_ref[0] = (jnp.dot(x1, woff_ref[...], preferred_element_type=jnp.float32)
                  + boff_ref[...])
    ml_ref[0] = (jnp.dot(x1, wmsk_ref[...], preferred_element_type=jnp.float32)
                 + bmsk_ref[...])


def dw_offset_mask(s_pad, w_dw, b_dw, ln_g, ln_b, w_off, b_off, w_msk, b_msk,
                   *, H, W, K, ln_eps):
    N, Hp, Wp, C = s_pad.shape
    L = H * W
    n_off = w_off.shape[1]
    n_msk = w_msk.shape[1]
    return pl.pallas_call(
        functools.partial(_dw_off_mask_kernel, H=H, W=W, K=K, ln_eps=ln_eps),
        out_shape=(jax.ShapeDtypeStruct((N, L, n_off), jnp.float32),
                   jax.ShapeDtypeStruct((N, L, n_msk), jnp.float32)),
        grid=(N,),
        in_specs=[
            pl.BlockSpec((1, Hp, Wp, C), lambda n: (n, 0, 0, 0)),
            pl.BlockSpec((K, K, C), lambda n: (0, 0, 0)),
            pl.BlockSpec((1, C), lambda n: (0, 0)),
            pl.BlockSpec((1, C), lambda n: (0, 0)),
            pl.BlockSpec((1, C), lambda n: (0, 0)),
            pl.BlockSpec((C, n_off), lambda n: (0, 0)),
            pl.BlockSpec((1, n_off), lambda n: (0, 0)),
            pl.BlockSpec((C, n_msk), lambda n: (0, 0)),
            pl.BlockSpec((1, n_msk), lambda n: (0, 0)),
        ],
        out_specs=(pl.BlockSpec((1, L, n_off), lambda n: (n, 0, 0)),
                   pl.BlockSpec((1, L, n_msk), lambda n: (n, 0, 0))),
        compiler_params=pltpu.CompilerParams(dimension_semantics=("parallel",)),
    )(s_pad, w_dw, b_dw.reshape(1, C), ln_g.reshape(1, C), ln_b.reshape(1, C),
      w_off, b_off.reshape(1, n_off), w_msk, b_msk.reshape(1, n_msk))


# ----------------------------------------------------------------------------
# Kernel 3: DCNv3 core — mask softmax + deformable bilinear gather + output_proj
#   + trailing BatchNorm + SiLU.  Grid = (batch, L-tiles); groups are looped
#   inside the kernel so the output block is ouc-wide.
#   Gather: per kernel point, one compare builds the (y0, x0) one-hot over the
#   guard-banded lane axis; the three remaining bilinear corners are derived by
#   pltpu.roll (XLU) with per-corner validity/weight column scales.
# ----------------------------------------------------------------------------
def _dcnv3_sample_kernel(xe_ref, off_ref, ml_ref, wop_ref, bop_ref, o_ref, *,
                         W, Hin, Win, K, dil, P, G, Cg, offset_scale, tile_L, S):
    Lext = xe_ref.shape[1]
    ouc = wop_ref.shape[1]
    lt = pl.program_id(1)

    xe = xe_ref[0]                      # (Lext, ouc) guard-banded padded features
    off = off_ref[0]                    # (tile_L, G*2*P)
    ml = ml_ref[0]                      # (tile_L, G*P)
    wop = wop_ref[...]                  # (ouc, ouc) output_proj with BN folded in

    # reference sampling points for the pixels of this L-tile
    row = (lt * tile_L
           + jax.lax.broadcasted_iota(jnp.int32, (tile_L, 1), 0)).astype(jnp.float32)
    hf = jnp.floor(row / float(W))
    wf = row - hf * float(W)
    kbase = float((dil * (K - 1)) // 2)
    ref_y = (kbase + 0.5 + hf) / float(Hin)
    ref_x = (kbase + 0.5 + wf) / float(Win)

    lane = jax.lax.broadcasted_iota(jnp.int32, (tile_L, Lext), 1)

    out = jnp.zeros((tile_L, ouc), jnp.float32) + bop_ref[...]
    for g in range(G):
        # fold output_proj into the gather: (acc_w @ x_g) @ W_g == acc_w @ (x_g @ W_g)
        xw_g = jnp.dot(xe[:, g * Cg:(g + 1) * Cg], wop[g * Cg:(g + 1) * Cg, :],
                       preferred_element_type=jnp.float32)          # (Lext, ouc)

        # softmax over the P kernel points of this group (denominator on the EUP)
        mlg = ml[:, g * P:(g + 1) * P]
        me = jnp.exp(mlg - jnp.max(mlg, axis=-1, keepdims=True))
        minv = pl.reciprocal(jnp.sum(me, axis=-1, keepdims=True), approx=True)

        acc_w = jnp.zeros((tile_L, Lext), jnp.float32)
        for p in range(P):
            gx = (-kbase + (p // K) * dil) / float(Win)
            gy = (-kbase + (p % K) * dil) / float(Hin)
            ox = off[:, g * 2 * P + 2 * p:g * 2 * P + 2 * p + 1]
            oy = off[:, g * 2 * P + 2 * p + 1:g * 2 * P + 2 * p + 2]
            loc_x = ref_x + gx * offset_scale + ox * (offset_scale / float(Win))
            loc_y = ref_y + gy * offset_scale + oy * (offset_scale / float(Hin))
            px = loc_x * float(Win) - 0.5     # grid_sample(align_corners=False)
            py = loc_y * float(Hin) - 0.5
            x0 = jnp.floor(px)
            y0 = jnp.floor(py)
            tx = px - x0
            ty = py - y0
            x0i = x0.astype(jnp.int32)
            y0i = y0.astype(jnp.int32)
            mp = me[:, p:p + 1] * minv

            vx0 = ((x0i >= 0) & (x0i <= Win - 1)).astype(jnp.float32)
            vx1 = ((x0i + 1 >= 0) & (x0i + 1 <= Win - 1)).astype(jnp.float32)
            vy0 = ((y0i >= 0) & (y0i <= Hin - 1)).astype(jnp.float32)
            vy1 = ((y0i + 1 >= 0) & (y0i + 1 <= Hin - 1)).astype(jnp.float32)
            wx0 = (1.0 - tx) * vx0
            wx1 = tx * vx1
            wy0 = (1.0 - ty) * vy0 * mp
            wy1 = ty * vy1 * mp

            # One compare builds the (y0, x0) corner; the other 3 corners are XLU
            # rolls of it.  The S leading zero rows of xe guarantee b >= 0 whenever
            # any corner is in bounds; wrap-around lanes either carry zero weight
            # (invalid corners) or hit zero rows of xe.
            b = y0i * Win + x0i + S
            onehot = (lane == b).astype(jnp.float32)
            rowhot = wx0 * onehot + wx1 * pltpu.roll(onehot, shift=1, axis=1)
            acc_w = acc_w + wy0 * rowhot + wy1 * pltpu.roll(rowhot, shift=Win, axis=1)

        out = out + jnp.dot(acc_w, xw_g, preferred_element_type=jnp.float32)

    # trailing BatchNorm (folded into wop/bop) + SiLU, reciprocal on the EUP
    out = out * pl.reciprocal(1.0 + jnp.exp(-out), approx=True)
    o_ref[0] = out


def dcnv3_sample_project(x_ext, off, mlog, wop, bop, *, H, W, Hin, Win, K, dil, P, G,
                         Cg, offset_scale, tile_L, S):
    N, Lext, ouc = x_ext.shape
    L = H * W
    assert L % tile_L == 0
    return pl.pallas_call(
        functools.partial(_dcnv3_sample_kernel, W=W, Hin=Hin, Win=Win, K=K, dil=dil,
                          P=P, G=G, Cg=Cg, offset_scale=offset_scale,
                          tile_L=tile_L, S=S),
        out_shape=jax.ShapeDtypeStruct((N, L, ouc), jnp.float32),
        grid=(N, L // tile_L),
        in_specs=[
            pl.BlockSpec((1, Lext, ouc), lambda n, l: (n, 0, 0)),
            pl.BlockSpec((1, tile_L, 2 * G * P), lambda n, l: (n, l, 0)),
            pl.BlockSpec((1, tile_L, G * P), lambda n, l: (n, l, 0)),
            pl.BlockSpec((ouc, ouc), lambda n, l: (0, 0)),
            pl.BlockSpec((1, ouc), lambda n, l: (0, 0)),
        ],
        out_specs=pl.BlockSpec((1, tile_L, ouc), lambda n, l: (n, l, 0)),
        compiler_params=pltpu.CompilerParams(
            dimension_semantics=("parallel", "parallel")),
    )(x_ext, off, mlog, wop, bop.reshape(1, ouc))


# ----------------------------------------------------------------------------
# tile pickers (keep row tiles large; keep >=2 grid steps for megacore balance)
# ----------------------------------------------------------------------------
def _pick_block_rows(R):
    for b in (1024, 512, 256, 128, 64, 32, 16, 8):
        if R % b == 0 and R // b >= 2:
            return b
    return R


def _pick_tile_l(L):
    # bounds acc_w = tile_L x Lext in VMEM; at real sizes raise vmem_limit_bytes
    # and shrink this cap per-generation (v7x: 64 MiB physical).
    for t in (256, 128, 64, 32, 16, 8):
        if L % t == 0:
            return t
    return L


# ----------------------------------------------------------------------------
# Full DCNV3_YOLO forward (Pallas).
# ----------------------------------------------------------------------------
def dcnv3_yolo_forward(x_nchw, prm, *, ouc, K, pad, G, dil, offset_scale=1.0,
                       bn_eps=1e-5, ln_eps=1e-6):
    N, inc, H, W = x_nchw.shape
    Cg = ouc // G
    P = K * K
    Hin, Win = H + 2 * pad, W + 2 * pad
    Lin = Hin * Win
    L = H * W
    R = N * L

    # fold BatchNorms into the adjacent matmul weights (weight-sized ops)
    sc1 = prm["bn1_g"] * jax.lax.rsqrt(prm["bn1_v"] + bn_eps)
    sh1 = prm["bn1_b"] - prm["bn1_m"] * sc1
    ws_f = prm["w_stem"] * sc1[None, :]
    sc2 = prm["bn2_g"] * jax.lax.rsqrt(prm["bn2_v"] + bn_eps)
    sh2 = prm["bn2_b"] - prm["bn2_m"] * sc2
    wop_f = prm["w_op"] * sc2[None, :]
    bop_f = prm["b_op"] * sc2 + sh2

    x_rows = jnp.transpose(x_nchw, (0, 2, 3, 1)).reshape(R, inc)

    # stem + input_proj (fused, two outputs)
    block_rows = _pick_block_rows(R)
    s_rows, xproj_rows = stem_input_proj(x_rows, ws_f, sh1,
                                         prm["w_ip"], prm["b_ip"], block_rows)

    # dw conv halo pad, then fused dw + LN + GELU + offset/mask kernel
    dpad = (K - 1) // 2
    s_img = s_rows.reshape(N, H, W, ouc)
    s_pad = jnp.pad(s_img, ((0, 0), (dpad, dpad), (dpad, dpad), (0, 0)))
    off, mlog = dw_offset_mask(s_pad, prm["w_dw"], prm["b_dw"], prm["ln_g"],
                               prm["ln_b"], prm["w_off"], prm["b_off"],
                               prm["w_msk"], prm["b_msk"],
                               H=H, W=W, K=K, ln_eps=ln_eps)

    # sampling operand: spatially padded projected features, flattened, with a
    # (Win+1)-row zero guard band in front (for roll-derived corners) and trailing
    # zero rows so the lane extent is a multiple of 128.
    S = Win + 1
    Lext = ((Lin + S + 127) // 128) * 128
    xp_img = xproj_rows.reshape(N, H, W, ouc)
    xp_pad = jnp.pad(xp_img, ((0, 0), (pad, pad), (pad, pad), (0, 0))).reshape(N, Lin, ouc)
    x_ext = jnp.pad(xp_pad, ((0, 0), (S, Lext - S - Lin), (0, 0)))

    tile_L = _pick_tile_l(L)
    out_rows = dcnv3_sample_project(x_ext, off, mlog, wop_f, bop_f,
                                    H=H, W=W, Hin=Hin, Win=Win, K=K, dil=dil, P=P,
                                    G=G, Cg=Cg, offset_scale=offset_scale,
                                    tile_L=tile_L, S=S)
    return jnp.transpose(out_rows.reshape(N, H, W, ouc), (0, 3, 1, 2))   # NCHW


# ----------------------------------------------------------------------------
# Pure-JAX reference (no Pallas) for correctness checking.
# ----------------------------------------------------------------------------
def reference_forward(x_nchw, prm, *, K, pad, G, dil, offset_scale=1.0,
                      bn_eps=1e-5, ln_eps=1e-6):
    HIGH = jax.lax.Precision.HIGHEST
    N, inc, H, W = x_nchw.shape
    ouc = prm["w_stem"].shape[1]
    Cg = ouc // G
    P = K * K
    Hin, Win = H + 2 * pad, W + 2 * pad
    dpad = (K - 1) // 2

    # stem
    w_oihw = jnp.transpose(prm["w_stem"], (1, 0))[:, :, None, None]
    y = jax.lax.conv_general_dilated(x_nchw, w_oihw, (1, 1), "VALID",
                                     dimension_numbers=("NCHW", "OIHW", "NCHW"),
                                     precision=HIGH)
    sc1 = prm["bn1_g"] / jnp.sqrt(prm["bn1_v"] + bn_eps)
    sh1 = prm["bn1_b"] - prm["bn1_m"] * sc1
    y = y * sc1[None, :, None, None] + sh1[None, :, None, None]
    y = y * jax.nn.sigmoid(y)
    s = jnp.transpose(y, (0, 2, 3, 1))   # NHWC

    xproj = jnp.matmul(s, prm["w_ip"], precision=HIGH) + prm["b_ip"]

    wdw_oihw = jnp.transpose(prm["w_dw"], (2, 0, 1))[:, None, :, :]
    x1 = jax.lax.conv_general_dilated(jnp.transpose(s, (0, 3, 1, 2)), wdw_oihw, (1, 1),
                                      [(dpad, dpad), (dpad, dpad)],
                                      dimension_numbers=("NCHW", "OIHW", "NCHW"),
                                      feature_group_count=ouc, precision=HIGH)
    x1 = x1 + prm["b_dw"][None, :, None, None]
    x1 = jnp.transpose(x1, (0, 2, 3, 1))
    mu = jnp.mean(x1, -1, keepdims=True)
    var = jnp.mean((x1 - mu) ** 2, -1, keepdims=True)
    x1 = (x1 - mu) * jax.lax.rsqrt(var + ln_eps) * prm["ln_g"] + prm["ln_b"]
    x1 = 0.5 * x1 * (1.0 + jax.lax.erf(x1 / jnp.sqrt(2.0)))

    offset = jnp.matmul(x1, prm["w_off"], precision=HIGH) + prm["b_off"]
    mlog = jnp.matmul(x1, prm["w_msk"], precision=HIGH) + prm["b_msk"]
    m = jax.nn.softmax(mlog.reshape(N, H, W, G, P), axis=-1)

    xpad = jnp.pad(xproj, ((0, 0), (pad, pad), (pad, pad), (0, 0)))
    hh = jnp.arange(H, dtype=jnp.float32)
    ww = jnp.arange(W, dtype=jnp.float32)
    base = (dil * (K - 1)) // 2 + 0.5
    ref_y = (base + hh) / Hin
    ref_x = (base + ww) / Win
    pidx = jnp.arange(P)
    gbase = -((dil * (K - 1)) // 2)
    gx = (gbase + (pidx // K) * dil) / Win
    gy = (gbase + (pidx % K) * dil) / Hin

    offr = offset.reshape(N, H, W, G, P, 2)
    loc_x = ref_x[None, None, :, None, None] + gx[None, None, None, None, :] * offset_scale \
        + offr[..., 0] * offset_scale / Win
    loc_y = ref_y[None, :, None, None, None] + gy[None, None, None, None, :] * offset_scale \
        + offr[..., 1] * offset_scale / Hin
    px = loc_x * Win - 0.5
    py = loc_y * Hin - 0.5
    x0 = jnp.floor(px)
    y0 = jnp.floor(py)
    tx = px - x0
    ty = py - y0

    xg = jnp.transpose(xpad.reshape(N, Hin * Win, G, Cg), (0, 2, 1, 3))   # (N,G,Lin,Cg)
    acc = jnp.zeros((N, H, W, G, P, Cg), jnp.float32)
    for dy in (0, 1):
        for dx in (0, 1):
            cx = x0 + dx
            cy = y0 + dy
            wgt = (ty if dy else 1.0 - ty) * (tx if dx else 1.0 - tx)
            valid = (cx >= 0) & (cx <= Win - 1) & (cy >= 0) & (cy <= Hin - 1)
            idx = jnp.clip((cy * Win + cx).astype(jnp.int32), 0, Hin * Win - 1)
            idx2 = jnp.transpose(idx, (0, 3, 1, 2, 4)).reshape(N, G, H * W * P)
            idxb = jnp.broadcast_to(idx2[..., None], (N, G, H * W * P, Cg))
            vals = jnp.take_along_axis(xg, idxb, axis=2).reshape(N, G, H, W, P, Cg)
            vals = jnp.transpose(vals, (0, 2, 3, 1, 4, 5))
            acc = acc + vals * (wgt * valid.astype(jnp.float32))[..., None]
    dcn = jnp.sum(acc * m[..., None], axis=4).reshape(N, H, W, ouc)

    out = jnp.matmul(dcn, prm["w_op"], precision=HIGH) + prm["b_op"]
    out = jnp.transpose(out, (0, 3, 1, 2))
    sc2 = prm["bn2_g"] / jnp.sqrt(prm["bn2_v"] + bn_eps)
    sh2 = prm["bn2_b"] - prm["bn2_m"] * sc2
    out = out * sc2[None, :, None, None] + sh2[None, :, None, None]
    return out * jax.nn.sigmoid(out)


# ----------------------------------------------------------------------------
# Deterministic synthetic parameters (shapes follow the PyTorch module).
# ----------------------------------------------------------------------------
def make_params(key, inc, ouc, K, G):
    P = K * K
    keys = jax.random.split(key, 21)
    n = lambda i, shape, s: s * jax.random.normal(keys[i], shape, jnp.float32)
    u = lambda i, shape, lo, hi: jax.random.uniform(keys[i], shape, jnp.float32, lo, hi)
    return {
        "w_stem": n(0, (inc, ouc), 0.3),          # Conv2d(inc, ouc, 1, bias=False)
        "bn1_g": u(1, (ouc,), 0.8, 1.2),
        "bn1_b": n(2, (ouc,), 0.1),
        "bn1_m": n(3, (ouc,), 0.1),
        "bn1_v": u(4, (ouc,), 0.5, 1.5),
        "w_ip": n(5, (ouc, ouc), 0.25),           # input_proj
        "b_ip": n(6, (ouc,), 0.1),
        "w_dw": n(7, (K, K, ouc), 0.2),           # depthwise conv weight [i, j, c]
        "b_dw": n(8, (ouc,), 0.1),
        "ln_g": u(9, (ouc,), 0.8, 1.2),
        "ln_b": n(10, (ouc,), 0.1),
        "w_off": n(11, (ouc, G * P * 2), 0.3),    # offset Linear
        "b_off": n(12, (G * P * 2,), 0.2),
        "w_msk": n(13, (ouc, G * P), 0.3),        # mask Linear
        "b_msk": n(14, (G * P,), 0.1),
        "w_op": n(15, (ouc, ouc), 0.25),          # output_proj
        "b_op": n(16, (ouc,), 0.1),
        "bn2_g": u(17, (ouc,), 0.8, 1.2),
        "bn2_b": n(18, (ouc,), 0.1),
        "bn2_m": n(19, (ouc,), 0.1),
        "bn2_v": u(20, (ouc,), 0.5, 1.5),
    }


if __name__ == "__main__":
    # DCNV3_YOLO(inc=8, ouc=16, k=3, s=1, p=None, g=2, d=1, act=True)
    inc, ouc, K, G, dil = 8, 16, 3, 2, 1
    pad = K // 2                       # autopad(3, None, 1) = 1
    N, H, W = 2, 16, 16

    key = jax.random.PRNGKey(0)
    kx, kp = jax.random.split(key)
    x = jax.random.normal(kx, (N, inc, H, W), jnp.float32)
    prm = make_params(kp, inc, ouc, K, G)

    out = dcnv3_yolo_forward(x, prm, ouc=ouc, K=K, pad=pad, G=G, dil=dil)
    out = jax.block_until_ready(out)
    assert out.shape == (N, ouc, H, W), out.shape

    ref = jax.block_until_ready(reference_forward(x, prm, K=K, pad=pad, G=G, dil=dil))
    err = float(jnp.max(jnp.abs(out - ref)))
    if not (err < 2e-2):
        raise AssertionError(f"Pallas output mismatch vs JAX reference: max abs err = {err}")
    print("KERNEL_OK")
</pallas_src>

<mosaic_0001>
module attributes {stable_mosaic.version = 11 : i64} {
  func.func @_stem_proj_kernel(%arg0: i32, %arg1: memref<256x8xf32, #tpu.memory_space<vmem>>, %arg2: memref<8x16xf32, #tpu.memory_space<vmem>>, %arg3: memref<1x16xf32, #tpu.memory_space<vmem>>, %arg4: memref<16x16xf32, #tpu.memory_space<vmem>>, %arg5: memref<1x16xf32, #tpu.memory_space<vmem>>, %arg6: memref<256x16xf32, #tpu.memory_space<vmem>>, %arg7: memref<256x16xf32, #tpu.memory_space<vmem>>) attributes {dimension_semantics = [#tpu.dimension_semantics<parallel>], iteration_bounds = array<i64: 2>, scalar_prefetch = 0 : i64, scratch_operands = 0 : i64, tpu.core_type = #tpu.core_type<tc>, window_params = [{transform_indices = @transform_0, window_bounds = array<i64: 256, 8>}, {pipeline_mode = #tpu.pipeline_mode<synchronous>, transform_indices = @transform_1, window_bounds = array<i64: 8, 16>}, {pipeline_mode = #tpu.pipeline_mode<synchronous>, transform_indices = @transform_2, window_bounds = array<i64: 1, 16>}, {pipeline_mode = #tpu.pipeline_mode<synchronous>, transform_indices = @transform_3, window_bounds = array<i64: 16, 16>}, {pipeline_mode = #tpu.pipeline_mode<synchronous>, transform_indices = @transform_4, window_bounds = array<i64: 1, 16>}, {transform_indices = @transform_5, window_bounds = array<i64: 256, 16>}, {transform_indices = @transform_6, window_bounds = array<i64: 256, 16>}]} {
    %c0 = arith.constant 0 : index
    %c0_0 = arith.constant 0 : index
    %0 = vector.load %arg1[%c0, %c0_0] : memref<256x8xf32, #tpu.memory_space<vmem>>, vector<256x8xf32>
    %c0_1 = arith.constant 0 : index
    %c0_2 = arith.constant 0 : index
    %1 = vector.load %arg2[%c0_1, %c0_2] : memref<8x16xf32, #tpu.memory_space<vmem>>, vector<8x16xf32>
    %cst = arith.constant dense<0.000000e+00> : vector<256x16xf32>
    %2 = tpu.matmul %0, %1, %cst {dimension_numbers = #tpu.dot_dimension_numbers<[1], [0], [0], [1], [0, 0, 1, 1], [], []>} : vector<256x8xf32>, vector<8x16xf32>, vector<256x16xf32> -> vector<256x16xf32>
    %c0_3 = arith.constant 0 : index
    %c0_4 = arith.constant 0 : index
    %3 = vector.load %arg3[%c0_3, %c0_4] : memref<1x16xf32, #tpu.memory_space<vmem>>, vector<1x16xf32>
    %4 = vector.broadcast %3 : vector<1x16xf32> to vector<256x16xf32>
    %5 = arith.addf %2, %4 : vector<256x16xf32>
    %cst_5 = arith.constant 0.000000e+00 : f32
    %6 = vector.broadcast %cst_5 : f32 to vector<256x16xf32>
    %7 = arith.subf %6, %5 : vector<256x16xf32>
    %8 = math.exp %7 : vector<256x16xf32>
    %cst_6 = arith.constant 1.000000e+00 : f32
    %9 = vector.broadcast %cst_6 : f32 to vector<256x16xf32>
    %10 = arith.addf %9, %8 : vector<256x16xf32>
    %cst_7 = arith.constant 1.000000e+00 : f32
    %11 = vector.broadcast %cst_7 : f32 to vector<256x16xf32>
    %12 = arith.divf %11, %10 : vector<256x16xf32>
    %13 = arith.mulf %5, %12 : vector<256x16xf32>
    %c0_8 = arith.constant 0 : index
    %c0_9 = arith.constant 0 : index
    %14 = vector.load %arg6[%c0_8, %c0_9] : memref<256x16xf32, #tpu.memory_space<vmem>>, vector<256x16xf32>
    tpu.vector_store %arg6[%c0_8, %c0_9], %13 {strides = array<i32>} : memref<256x16xf32, #tpu.memory_space<vmem>>, vector<256x16xf32>,
    %c0_10 = arith.constant 0 : index
    %c0_11 = arith.constant 0 : index
    %15 = vector.load %arg4[%c0_10, %c0_11] : memref<16x16xf32, #tpu.memory_space<vmem>>, vector<16x16xf32>
    %cst_12 = arith.constant dense<0.000000e+00> : vector<256x16xf32>
    %16 = tpu.matmul %13, %15, %cst_12 {dimension_numbers = #tpu.dot_dimension_numbers<[1], [0], [0], [1], [0, 0, 1, 1], [], []>} : vector<256x16xf32>, vector<16x16xf32>, vector<256x16xf32> -> vector<256x16xf32>
    %c0_13 = arith.constant 0 : index
    %c0_14 = arith.constant 0 : index
    %17 = vector.load %arg5[%c0_13, %c0_14] : memref<1x16xf32, #tpu.memory_space<vmem>>, vector<1x16xf32>
    %18 = vector.broadcast %17 : vector<1x16xf32> to vector<256x16xf32>
    %19 = arith.addf %16, %18 : vector<256x16xf32>
    %c0_15 = arith.constant 0 : index
    %c0_16 = arith.constant 0 : index
    %20 = vector.load %arg7[%c0_15, %c0_16] : memref<256x16xf32, #tpu.memory_space<vmem>>, vector<256x16xf32>
    tpu.vector_store %arg7[%c0_15, %c0_16], %19 {strides = array<i32>} : memref<256x16xf32, #tpu.memory_space<vmem>>, vector<256x16xf32>,
    return
  }
  func.func @transform_0(%arg0: i32) -> (i32, i32) {
    %c0_i32 = arith.constant 0 : i32
    %c0_i32_0 = arith.constant 0 : i32
    return %arg0, %c0_i32 : i32, i32
  }
  func.func @transform_1(%arg0: i32) -> (i32, i32) {
    %c0_i32 = arith.constant 0 : i32
    %c0_i32_0 = arith.constant 0 : i32
    %c0_i32_1 = arith.constant 0 : i32
    return %c0_i32, %c0_i32_0 : i32, i32
  }
  func.func @transform_2(%arg0: i32) -> (i32, i32) {
    %c0_i32 = arith.constant 0 : i32
    %c0_i32_0 = arith.constant 0 : i32
    %c0_i32_1 = arith.constant 0 : i32
    return %c0_i32, %c0_i32_0 : i32, i32
  }
  func.func @transform_3(%arg0: i32) -> (i32, i32) {
    %c0_i32 = arith.constant 0 : i32
    %c0_i32_0 = arith.constant 0 : i32
    %c0_i32_1 = arith.constant 0 : i32
    return %c0_i32, %c0_i32_0 : i32, i32
  }
  func.func @transform_4(%arg0: i32) -> (i32, i32) {
    %c0_i32 = arith.constant 0 : i32
    %c0_i32_0 = arith.constant 0 : i32
    %c0_i32_1 = arith.constant 0 : i32
    return %c0_i32, %c0_i32_0 : i32, i32
  }
  func.func @transform_5(%arg0: i32) -> (i32, i32) {
    %c0_i32 = arith.constant 0 : i32
    %c0_i32_0 = arith.constant 0 : i32
    return %arg0, %c0_i32 : i32, i32
  }
  func.func @transform_6(%arg0: i32) -> (i32, i32) {
    %c0_i32 = arith.constant 0 : i32
    %c0_i32_0 = arith.constant 0 : i32
    return %arg0, %c0_i32 : i32, i32
  }
}

</mosaic_0001>

<llo_original>
// kernel: tpu_custom_call.1
$region0: #{tpu_custom_call.1}
  #allocation0 [shape = 'u32[]', space=smem, size = 0x4, offset = 0x4, fixed_abs, tag = 'smem constant byte address 0x4 - core index']
  #allocation1 [shape = 'u32[144,128]{1,0:T(1,128)}', space=vmem, size = 0x12000, scoped, tag = 'internal scratch']
  %s0 = inlined_call_operand.vmem [shape: f32[512,8], index: 0, kind: input, shape index: {}]
  %s1 = inlined_call_operand.vmem [shape: f32[8,16], index: 1, kind: input, shape index: {}]
  %s2 = inlined_call_operand.vmem [shape: f32[1,16], index: 2, kind: input, shape index: {}]
  %s3 = inlined_call_operand.vmem [shape: f32[16,16], index: 3, kind: input, shape index: {}]
  %s4 = inlined_call_operand.vmem [shape: f32[1,16], index: 4, kind: input, shape index: {}]
  %s5 = inlined_call_operand.vmem [shape: f32[512,16], index: 5, kind: output, shape index: {0}]
  %s6 = inlined_call_operand.vmem [shape: f32[512,16], index: 6, kind: output, shape index: {1}]
  %7 = xla_tuple %s5, %s6
  %s8 = sld [smem:[#allocation0]]
  $region61: #{tpu_custom_call.1} parent=0
    _
  %s10 = ssub.s32 1, %s8
  %s11 = scalar_select 0, %s10, %s8
  loop: start=0, step=1, limit=4
  $region2: #{tpu_custom_call.1} parent=0 // loop_pre_header
    _
  $region3: #{tpu_custom_call.1} parent=0 // loop_header
    %s13 = sphi 0, %s17
    %p14 = scmp.ge.s32.totalorder %s13, 4
    %s23 = sphi 0, %s25
    %s26 = sphi 0, %s23
    %s27 = sphi 0, %s26
    %s43 = sphi 0, %s27
    %s47 = sphi 0, %s47
    %s49 = sphi 0, %s47
    %s50 = sphi 0, %s49
    %s64 = sphi 0, %s50
    %s68 = sphi 0, %s68
    %s70 = sphi 0, %s68
    %s71 = sphi 0, %s70
    %s85 = sphi 0, %s71
    %s89 = sphi 0, %s89
    %s91 = sphi 0, %s89
    %s92 = sphi 0, %s91
    %s106 = sphi 0, %s92
    %s110 = sphi 0, %s110
    %s112 = sphi 0, %s110
    %s113 = sphi 0, %s112
    %s127 = sphi 0, %s113
    %s133 = sphi 0, %s135
    %s136 = sphi 0, %s133
    %s137 = sphi 0, %s136
    %s153 = sphi 0, %s137
    %s159 = sphi 0, %s161
    %s162 = sphi 0, %s159
    %s163 = sphi 0, %s162
    %s179 = sphi 0, %s163
  $region4: #{tpu_custom_call.1} parent=0 // loop_header_branch
    %16 = sbr.rel (%p14) target = $region8
  $region5: #{tpu_custom_call.1} parent=0 // loop_body
    %s18 = ssub.s32 %s13, 1
    %s19 = ssub.s32 %s13, 2
    %s20 = sadd.s32 %s13, 1
    %s21 = ssub.s32 %s13, %s20
    %p22 = scmp.eq.s32.totalorder %s21, 0
    %s24 = sadd.s32 %s23, 1
    %s25 = scalar_select %p22, %s23, %s24
    %p28 = pneg %p22
    %p29 = scmp.eq.s32.totalorder %s13, 1
    %p30 = por %p28, %p29
    %p31 = scmp.ne.s32.totalorder %s23, %s26
    %p32 = scmp.eq.s32.totalorder %s13, 0
    %p33 = por %p31, %p32
    %p34 = scmp.ne.s32.totalorder %s23, %s26
    %p35 = scmp.eq.s32.totalorder %s18, 1
    %p36 = por %p34, %p35
    %p37 = scmp.ne.s32.totalorder %s26, %s27
    %p38 = scmp.eq.s32.totalorder %s18, 0
    %p39 = por %p37, %p38
    %p40 = scmp.ne.s32.totalorder %s26, %s27
    %p41 = scmp.eq.s32.totalorder %s19, 1
    %p42 = por %p40, %p41
    %p44 = scmp.ne.s32.totalorder %s27, %s43
    %p45 = scmp.eq.s32.totalorder %s19, 0
    %p46 = por %p44, %p45
    %s48 = sadd.s32 %s47, 1
    %p51 = scmp.eq.s32.totalorder %s13, 1
    %p52 = scmp.ne.s32.totalorder %s47, %s49
    %p53 = scmp.eq.s32.totalorder %s13, 0
    %p54 = por %p52, %p53
    %p55 = scmp.ne.s32.totalorder %s47, %s49
    %p56 = scmp.eq.s32.totalorder %s18, 1
    %p57 = por %p55, %p56
    %p58 = scmp.ne.s32.totalorder %s49, %s50
    %p59 = scmp.eq.s32.totalorder %s18, 0
    %p60 = por %p58, %p59
    %p61 = scmp.ne.s32.totalorder %s49, %s50
    %p62 = scmp.eq.s32.totalorder %s19, 1
    %p63 = por %p61, %p62
    %p65 = scmp.ne.s32.totalorder %s50, %s64
    %p66 = scmp.eq.s32.totalorder %s19, 0
    %p67 = por %p65, %p66
    %s69 = sadd.s32 %s68, 1
    %p72 = scmp.eq.s32.totalorder %s13, 1
    %p73 = scmp.ne.s32.totalorder %s68, %s70
    %p74 = scmp.eq.s32.totalorder %s13, 0
    %p75 = por %p73, %p74
    %p76 = scmp.ne.s32.totalorder %s68, %s70
    %p77 = scmp.eq.s32.totalorder %s18, 1
    %p78 = por %p76, %p77
    %p79 = scmp.ne.s32.totalorder %s70, %s71
    %p80 = scmp.eq.s32.totalorder %s18, 0
    %p81 = por %p79, %p80
    %p82 = scmp.ne.s32.totalorder %s70, %s71
    %p83 = scmp.eq.s32.totalorder %s19, 1
    %p84 = por %p82, %p83
    %p86 = scmp.ne.s32.totalorder %s71, %s85
    %p87 = scmp.eq.s32.totalorder %s19, 0
    %p88 = por %p86, %p87
    %s90 = sadd.s32 %s89, 1
    %p93 = scmp.eq.s32.totalorder %s13, 1
    %p94 = scmp.ne.s32.totalorder %s89, %s91
    %p95 = scmp.eq.s32.totalorder %s13, 0
    %p96 = por %p94, %p95
    %p97 = scmp.ne.s32.totalorder %s89, %s91
    %p98 = scmp.eq.s32.totalorder %s18, 1
    %p99 = por %p97, %p98
    %p100 = scmp.ne.s32.totalorder %s91, %s92
    %p101 = scmp.eq.s32.totalorder %s18, 0
    %p102 = por %p100, %p101
    %p103 = scmp.ne.s32.totalorder %s91, %s92
    %p104 = scmp.eq.s32.totalorder %s19, 1
    %p105 = por %p103, %p104
    %p107 = scmp.ne.s32.totalorder %s92, %s106
    %p108 = scmp.eq.s32.totalorder %s19, 0
    %p109 = por %p107, %p108
    %s111 = sadd.s32 %s110, 1
    %p114 = scmp.eq.s32.totalorder %s13, 1
    %p115 = scmp.ne.s32.totalorder %s110, %s112
    %p116 = scmp.eq.s32.totalorder %s13, 0
    %p117 = por %p115, %p116
    %p118 = scmp.ne.s32.totalorder %s110, %s112
    %p119 = scmp.eq.s32.totalorder %s18, 1
    %p120 = por %p118, %p119
    %p121 = scmp.ne.s32.totalorder %s112, %s113
    %p122 = scmp.eq.s32.totalorder %s18, 0
    %p123 = por %p121, %p122
    %p124 = scmp.ne.s32.totalorder %s112, %s113
    %p125 = scmp.eq.s32.totalorder %s19, 1
    %p126 = por %p124, %p125
    %p128 = scmp.ne.s32.totalorder %s113, %s127
    %p129 = scmp.eq.s32.totalorder %s19, 0
    %p130 = por %p128, %p129
    %s131 = ssub.s32 %s13, %s20
    %p132 = scmp.eq.s32.totalorder %s131, 0
    %s134 = sadd.s32 %s133, 1
    %s135 = scalar_select %p132, %s133, %s134
    %p138 = pneg %p132
    %p139 = scmp.eq.s32.totalorder %s13, 1
    %p140 = por %p138, %p139
    %p141 = scmp.ne.s32.totalorder %s133, %s136
    %p142 = scmp.eq.s32.totalorder %s13, 0
    %p143 = por %p141, %p142
    %p144 = scmp.ne.s32.totalorder %s133, %s136
    %p145 = scmp.eq.s32.totalorder %s18, 1
    %p146 = por %p144, %p145
    %p147 = scmp.ne.s32.totalorder %s136, %s137
    %p148 = scmp.eq.s32.totalorder %s18, 0
    %p149 = por %p147, %p148
    %p150 = scmp.ne.s32.totalorder %s136, %s137
    %p151 = scmp.eq.s32.totalorder %s19, 1
    %p152 = por %p150, %p151
    %p154 = scmp.ne.s32.totalorder %s137, %s153
    %p155 = scmp.eq.s32.totalorder %s19, 0
    %p156 = por %p154, %p155
    %s157 = ssub.s32 %s13, %s20
    %p158 = scmp.eq.s32.totalorder %s157, 0
    %s160 = sadd.s32 %s159, 1
    %s161 = scalar_select %p158, %s159, %s160
    %p164 = pneg %p158
    %p165 = scmp.eq.s32.totalorder %s13, 1
    %p166 = por %p164, %p165
    %p167 = scmp.ne.s32.totalorder %s159, %s162
    %p168 = scmp.eq.s32.totalorder %s13, 0
    %p169 = por %p167, %p168
    %p170 = scmp.ne.s32.totalorder %s159, %s162
    %p171 = scmp.eq.s32.totalorder %s18, 1
    %p172 = por %p170, %p171
    %p173 = scmp.ne.s32.totalorder %s162, %s163
    %p174 = scmp.eq.s32.totalorder %s18, 0
    %p175 = por %p173, %p174
    %p176 = scmp.ne.s32.totalorder %s162, %s163
    %p177 = scmp.eq.s32.totalorder %s19, 1
    %p178 = por %p176, %p177
    %p180 = scmp.ne.s32.totalorder %s163, %s179
    %p181 = scmp.eq.s32.totalorder %s19, 0
    %p182 = por %p180, %p181
    %p183 = scmp.le.s32.totalorder 1, %s13
    %p184 = scmp.lt.s32.totalorder %s13, 3
    %p185 = pnand %p183, %p184
    %p186 = pneg %p185
    // Predicated region
    $region9: #{tpu_custom_call.1} parent=5 // pred_check
      _
    $region10: #{tpu_custom_call.1} parent=5 // pred_check_branch
      %188 = sbr.rel (%p185) target = $region12
    $region11: #{tpu_custom_call.1} parent=5 // pred_region
      %s189 = ssub.s32 %s13, 1
      // Predicated region
      $region13: #{tpu_custom_call.1} parent=11 // pred_check
        %p190 = pneg %p60
      $region14: #{tpu_custom_call.1} parent=11 // pred_check_branch
        %192 = sbr.rel (%p190) target = $region16
      $region15: #{tpu_custom_call.1} parent=11 // pred_region
        _
      $region16: #{tpu_custom_call.1} parent=11 // pred_fallthru
        _
      // Predicated region
      $region17: #{tpu_custom_call.1} parent=11 // pred_check
        %p193 = pneg %p81
      $region18: #{tpu_custom_call.1} parent=11 // pred_check_branch
        %195 = sbr.rel (%p193) target = $region20
      $region19: #{tpu_custom_call.1} parent=11 // pred_region
        _
      $region20: #{tpu_custom_call.1} parent=11 // pred_fallthru
        _
      // Predicated region
      $region21: #{tpu_custom_call.1} parent=11 // pred_check
        %p196 = pneg %p102
      $region22: #{tpu_custom_call.1} parent=11 // pred_check_branch
        %198 = sbr.rel (%p196) target = $region24
      $region23: #{tpu_custom_call.1} parent=11 // pred_region
        _
      $region24: #{tpu_custom_call.1} parent=11 // pred_fallthru
        _
      // Predicated region
      $region25: #{tpu_custom_call.1} parent=11 // pred_check
        %p199 = pneg %p123
      $region26: #{tpu_custom_call.1} parent=11 // pred_check_branch
        %201 = sbr.rel (%p199) target = $region28
      $region27: #{tpu_custom_call.1} parent=11 // pred_region
        _
      $region28: #{tpu_custom_call.1} parent=11 // pred_fallthru
        _
    $region12: #{tpu_custom_call.1} parent=5 // pred_fallthru
      _
    %p202 = scmp.lt.s32.totalorder %s13, 2
    // Predicated region
    $region29: #{tpu_custom_call.1} parent=5 // pred_check
      %p203 = pneg %p202
    $region30: #{tpu_custom_call.1} parent=5 // pred_check_branch
      %205 = sbr.rel (%p203) target = $region32
    $region31: #{tpu_custom_call.1} parent=5 // pred_region
      // Predicated region
      $region33: #{tpu_custom_call.1} parent=31 // pred_check
        %p206 = pneg %p33
      $region34: #{tpu_custom_call.1} parent=31 // pred_check_branch
        %208 = sbr.rel (%p206) target = $region36
      $region35: #{tpu_custom_call.1} parent=31 // pred_region
        %s209 = smul.u32 32, %s13
        %p210 = scmp.lt.s32.totalorder %s209, 63
        %s211 = scalar_select %p210, %s209, 63
        %s212 = smul.addr %s211, 8
        %s213 = scalar_lea.vmem %s0, %s212
        %s214 = smul.u32 32, %s13
      $region36: #{tpu_custom_call.1} parent=31 // pred_fallthru
        _
    $region32: #{tpu_custom_call.1} parent=5 // pred_fallthru
      _
    %p215 = scmp.le.s32.totalorder 1, %s13
    %p216 = scmp.lt.s32.totalorder %s13, 3
    %p217 = pnand %p215, %p216
    %p218 = pneg %p217
    // Predicated region
    $region37: #{tpu_custom_call.1} parent=5 // pred_check
      _
    $region38: #{tpu_custom_call.1} parent=5 // pred_check_branch
      %220 = sbr.rel (%p217) target = $region40
    $region39: #{tpu_custom_call.1} parent=5 // pred_region
      %s221 = ssub.s32 %s13, 1
      %s222 = smul.u32 32, %s18
      %p223 = scmp.lt.s32.totalorder %s222, 63
      %s224 = scalar_select %p223, %s222, 63
      %s225 = smul.addr %s224, 8
      %s226 = scalar_lea.vmem %s0, %s225
      %p227 = pneg %p39
      %p228 = pneg %p36
      %p229 = pneg %p60
      %p230 = pneg %p57
      %p231 = pneg %p81
      %p232 = pneg %p78
      %p233 = pneg %p102
      %p234 = pneg %p99
      %p235 = pneg %p123
      %p236 = pneg %p120
      %p237 = pneg %p149
      %p238 = pneg %p146
      %s239 = smul.u32 32, %s18
      %p240 = scmp.lt.s32.totalorder %s239, 63
      %s241 = scalar_select %p240, %s239, 63
      %s242 = smul.addr %s241, 8
      %s243 = scalar_lea.vmem %s5, %s242
      %p244 = pneg %p175
      %p245 = pneg %p172
      %s246 = smul.u32 32, %s18
      %p247 = scmp.lt.s32.totalorder %s246, 63
      %s248 = scalar_select %p247, %s246, 63
      %s249 = smul.addr %s248, 8
      %s250 = scalar_lea.vmem %s6, %s249
      %s251 = smul.u32 32, %s18
      %p252 = scmp.lt.s32.totalorder %s251, 63
      %s253 = scalar_select %p252, %s251, 63
      %s254 = smul.addr %s253, 8
      %s255 = scalar_lea.vmem %s0, %s254
      %s256 = smul.u32 32, %s18
      %s257 = smul.u32 32, %s18
      %p258 = scmp.lt.s32.totalorder %s257, 63
      %s259 = scalar_select %p258, %s257, 63
      %s260 = smul.addr %s259, 8
      %s261 = scalar_lea.vmem %s5, %s260
      %s262 = smul.u32 32, %s18
      %s263 = smul.u32 32, %s18
      %p264 = scmp.lt.s32.totalorder %s263, 63
      %s265 = scalar_select %p264, %s263, 63
      %s266 = smul.addr %s265, 8
      %s267 = scalar_lea.vmem %s6, %s266
      %s268 = smul.u32 32, %s18
      %v269 = vld [vmem:[%s255] sm:$0xff]
      %v270 = vld [vmem:[%s255 + $0x8] sm:$0xff]
      %v271 = vld [vmem:[%s255 + $0x10] sm:$0xff]
      %v272 = vld [vmem:[%s255 + $0x18] sm:$0xff]
      %v273 = vld [vmem:[%s255 + $0x20] sm:$0xff]
      %v274 = vld [vmem:[%s255 + $0x28] sm:$0xff]
      %v275 = vld [vmem:[%s255 + $0x30] sm:$0xff]
      %v276 = vld [vmem:[%s255 + $0x38] sm:$0xff]
      %v277 = vld [vmem:[%s255 + $0x40] sm:$0xff]
      %v278 = vld [vmem:[%s255 + $0x48] sm:$0xff]
      %v279 = vld [vmem:[%s255 + $0x50] sm:$0xff]
      %v280 = vld [vmem:[%s255 + $0x58] sm:$0xff]
      %v281 = vld [vmem:[%s255 + $0x60] sm:$0xff]
      %v282 = vld [vmem:[%s255 + $0x68] sm:$0xff]
      %v283 = vld [vmem:[%s255 + $0x70] sm:$0xff]
      %v284 = vld [vmem:[%s255 + $0x78] sm:$0xff]
      %v285 = vld [vmem:[%s255 + $0x80] sm:$0xff]
      %v286 = vld [vmem:[%s255 + $0x88] sm:$0xff]
      %v287 = vld [vmem:[%s255 + $0x90] sm:$0xff]
      %v288 = vld [vmem:[%s255 + $0x98] sm:$0xff]
      %v289 = vld [vmem:[%s255 + $0xa0] sm:$0xff]
      %v290 = vld [vmem:[%s255 + $0xa8] sm:$0xff]
      %v291 = vld [vmem:[%s255 + $0xb0] sm:$0xff]
      %v292 = vld [vmem:[%s255 + $0xb8] sm:$0xff]
      %v293 = vld [vmem:[%s255 + $0xc0] sm:$0xff]
      %v294 = vld [vmem:[%s255 + $0xc8] sm:$0xff]
      %v295 = vld [vmem:[%s255 + $0xd0] sm:$0xff]
      %v296 = vld [vmem:[%s255 + $0xd8] sm:$0xff]
      %v297 = vld [vmem:[%s255 + $0xe0] sm:$0xff]
      %v298 = vld [vmem:[%s255 + $0xe8] sm:$0xff]
      %v299 = vld [vmem:[%s255 + $0xf0] sm:$0xff]
      %v300 = vld [vmem:[%s255 + $0xf8] sm:$0xff]
      %v301 = vld [vmem:[%s1] sm:$0xff]
      %v302 = vld [vmem:[%s2] sm:$0x1]
      %v304 = vlaneseq
      %v305 = vshrl.u32 %v304, 7
      %v306 = vsub.s32 0, %v305
      %v307 = vrot.slane %v302, %v306
      %vm309 = vcmask 64512
      %v311 = vsel %vm309, %v269, 0
      %v314 = vsel %vm309, %v270, 0
      %v317 = vsel %vm309, %v271, 0
      %v320 = vsel %vm309, %v272, 0
      %v323 = vsel %vm309, %v273, 0
      %v326 = vsel %vm309, %v274, 0
      %v329 = vsel %vm309, %v275, 0
      %v332 = vsel %vm309, %v276, 0
      %v335 = vsel %vm309, %v277, 0
      %v338 = vsel %vm309, %v278, 0
      %v341 = vsel %vm309, %v279, 0
      %v344 = vsel %vm309, %v280, 0
      %v347 = vsel %vm309, %v281, 0
      %v350 = vsel %vm309, %v282, 0
      %v353 = vsel %vm309, %v283, 0
      %v356 = vsel %vm309, %v284, 0
      %v359 = vsel %vm309, %v285, 0
      %v362 = vsel %vm309, %v286, 0
      %v365 = vsel %vm309, %v287, 0
      %v368 = vsel %vm309, %v288, 0
      %v371 = vsel %vm309, %v289, 0
      %v374 = vsel %vm309, %v290, 0
      %v377 = vsel %vm309, %v291, 0
      %v380 = vsel %vm309, %v292, 0
      %v383 = vsel %vm309, %v293, 0
      %v386 = vsel %vm309, %v294, 0
      %v389 = vsel %vm309, %v295, 0
      %v392 = vsel %vm309, %v296, 0
      %v395 = vsel %vm309, %v297, 0
      %v398 = vsel %vm309, %v298, 0
      %v401 = vsel %vm309, %v299, 0
      %v404 = vsel %vm309, %v300, 0
      %406 = vmatprep.subr.mxu0 0.0
      %407 = vmatpush1.msra.mxu0 0.0
      %408 = vmatprep.subr.mxu0 0.0
      %409 = vmatpush1.msra.mxu0 0.0
      %410 = vmatprep.subr.mxu0 0.0
      %411 = vmatpush1.msra.mxu0 0.0
      %412 = vmatprep.subr.mxu0 0.0
      %413 = vmatpush1.msra.mxu0 0.0
      %414 = vmatprep.subr.mxu0 0.0
      %415 = vmatpush1.msra.mxu0 0.0
      %416 = vmatprep.subr.mxu0 0.0
      %417 = vmatpush1.msra.mxu0 0.0
      %418 = vmatprep.subr.mxu0 0.0
      %419 = vmatpush1.msra.mxu0 0.0
      %420 = vmatprep.subr.mxu0 0.0
      %421 = vmatpush1.msra.mxu0 0.0
      %422 = vmatprep.subr.mxu0 0.0
      %423 = vmatpush1.msra.mxu0 0.0
      %424 = vmatprep.subr.mxu0 0.0
      %425 = vmatpush1.msra.mxu0 0.0
      %426 = vmatprep.subr.mxu0 0.0
      %427 = vmatpush1.msra.mxu0 0.0
      %428 = vmatprep.subr.mxu0 0.0
      %429 = vmatpush1.msra.mxu0 0.0
      %430 = vmatprep.subr.mxu0 0.0
      %431 = vmatpush1.msra.mxu0 0.0
      %432 = vmatprep.subr.mxu0 0.0
      %433 = vmatpush1.msra.mxu0 0.0
      %434 = vmatprep.subr.mxu0 0.0
      %435 = vmatpush1.msra.mxu0 0.0
      %436 = vmatprep.subr.mxu0 0.0
      %437 = vmatpush1.msra.mxu0 %v301
      %438 = vmatprep.subr.mxu0 0.0
      %439 = vmatpush2.msra.mxu0 0.0
      %440 = vmatprep.subr.mxu0 0.0
      %441 = vmatpush2.msra.mxu0 0.0
      %442 = vmatprep.subr.mxu0 0.0
      %443 = vmatpush2.msra.mxu0 0.0
      %444 = vmatprep.subr.mxu0 0.0
      %445 = vmatpush2.msra.mxu0 0.0
      %446 = vmatprep.subr.mxu0 0.0
      %447 = vmatpush2.msra.mxu0 0.0
      %448 = vmatprep.subr.mxu0 0.0
      %449 = vmatpush2.msra.mxu0 0.0
      %450 = vmatprep.subr.mxu0 0.0
      %451 = vmatpush2.msra.mxu0 0.0
      %452 = vmatprep.subr.mxu0 0.0
      %453 = vmatpush2.msra.mxu0 0.0
      %454 = vmatprep.subr.mxu0 0.0
      %455 = vmatpush2.msra.mxu0 0.0
      %456 = vmatprep.subr.mxu0 0.0
      %457 = vmatpush2.msra.mxu0 0.0
      %458 = vmatprep.subr.mxu0 0.0
      %459 = vmatpush2.msra.mxu0 0.0
      %460 = vmatprep.subr.mxu0 0.0
      %461 = vmatpush2.msra.mxu0 0.0
      %462 = vmatprep.subr.mxu0 0.0
      %463 = vmatpush2.msra.mxu0 0.0
      %464 = vmatprep.subr.mxu0 0.0
      %465 = vmatpush2.msra.mxu0 0.0
      %466 = vmatprep.subr.mxu0 0.0
      %467 = vmatpush2.msra.mxu0 0.0
      %468 = vmatprep.subr.mxu0 0.0
      %469 = vmatpush2.msra.mxu0 0.0
      %470 = vmatprep.mubr.f32.mxu0 0.0
      %471 = vmatmul.mubr.f32.gmra.mxu0 %v311
      %v472 = vpop.f32.mrf.mxu0
      %v473 = vadd.f32 %v307, %v472
      %v474 = vpop.f32.mrf.mxu0
      %475 = vmatprep.mubr.f32.mxu0 0.0
      %476 = vmatmul.mubr.f32.gmra.mxu0 %v314
      %v477 = vpop.f32.mrf.mxu0
      %v478 = vadd.f32 %v307, %v477
      %v479 = vpop.f32.mrf.mxu0
      %480 = vmatprep.mubr.f32.mxu0 0.0
      %481 = vmatmul.mubr.f32.gmra.mxu0 %v317
      %v482 = vpop.f32.mrf.mxu0
      %v483 = vadd.f32 %v307, %v482
      %v484 = vpop.f32.mrf.mxu0
      %485 = vmatprep.mubr.f32.mxu0 0.0
      %486 = vmatmul.mubr.f32.gmra.mxu0 %v320
      %v487 = vpop.f32.mrf.mxu0
      %v488 = vadd.f32 %v307, %v487
      %v489 = vpop.f32.mrf.mxu0
      %490 = vmatprep.mubr.f32.mxu0 0.0
      %491 = vmatmul.mubr.f32.gmra.mxu0 %v323
      %v492 = vpop.f32.mrf.mxu0
      %v493 = vadd.f32 %v307, %v492
      %v494 = vpop.f32.mrf.mxu0
      %495 = vmatprep.mubr.f32.mxu0 0.0
      %496 = vmatmul.mubr.f32.gmra.mxu0 %v326
      %v497 = vpop.f32.mrf.mxu0
      %v498 = vadd.f32 %v307, %v497
      %v499 = vpop.f32.mrf.mxu0
      %500 = vmatprep.mubr.f32.mxu0 0.0
      %501 = vmatmul.mubr.f32.gmra.mxu0 %v329
      %v502 = vpop.f32.mrf.mxu0
      %v503 = vadd.f32 %v307, %v502
      %v504 = vpop.f32.mrf.mxu0
      %505 = vmatprep.mubr.f32.mxu0 0.0
      %506 = vmatmul.mubr.f32.gmra.mxu0 %v332
      %v507 = vpop.f32.mrf.mxu0
      %v508 = vadd.f32 %v307, %v507
      %v509 = vpop.f32.mrf.mxu0
      %510 = vmatprep.mubr.f32.mxu0 0.0
      %511 = vmatmul.mubr.f32.gmra.mxu0 %v335
      %v512 = vpop.f32.mrf.mxu0
      %v513 = vadd.f32 %v307, %v512
      %v514 = vpop.f32.mrf.mxu0
      %515 = vmatprep.mubr.f32.mxu0 0.0
      %516 = vmatmul.mubr.f32.gmra.mxu0 %v338
      %v517 = vpop.f32.mrf.mxu0
      %v518 = vadd.f32 %v307, %v517
      %v519 = vpop.f32.mrf.mxu0
      %520 = vmatprep.mubr.f32.mxu0 0.0
      %521 = vmatmul.mubr.f32.gmra.mxu0 %v341
      %v522 = vpop.f32.mrf.mxu0
      %v523 = vadd.f32 %v307, %v522
      %v524 = vpop.f32.mrf.mxu0
      %525 = vmatprep.mubr.f32.mxu0 0.0
      %526 = vmatmul.mubr.f32.gmra.mxu0 %v344
      %v527 = vpop.f32.mrf.mxu0
      %v528 = vadd.f32 %v307, %v527
      %v529 = vpop.f32.mrf.mxu0
      %530 = vmatprep.mubr.f32.mxu0 0.0
      %531 = vmatmul.mubr.f32.gmra.mxu0 %v347
      %v532 = vpop.f32.mrf.mxu0
      %v533 = vadd.f32 %v307, %v532
      %v534 = vpop.f32.mrf.mxu0
      %535 = vmatprep.mubr.f32.mxu0 0.0
      %536 = vmatmul.mubr.f32.gmra.mxu0 %v350
      %v537 = vpop.f32.mrf.mxu0
      %v538 = vadd.f32 %v307, %v537
      %v539 = vpop.f32.mrf.mxu0
      %540 = vmatprep.mubr.f32.mxu0 0.0
      %541 = vmatmul.mubr.f32.gmra.mxu0 %v353
      %v542 = vpop.f32.mrf.mxu0
      %v543 = vadd.f32 %v307, %v542
      %v544 = vpop.f32.mrf.mxu0
      %545 = vmatprep.mubr.f32.mxu0 0.0
      %546 = vmatmul.mubr.f32.gmra.mxu0 %v356
      %v547 = vpop.f32.mrf.mxu0
      %v548 = vadd.f32 %v307, %v547
      %v549 = vpop.f32.mrf.mxu0
      %550 = vmatprep.mubr.f32.mxu0 0.0
      %551 = vmatmul.mubr.f32.gmra.mxu0 %v359
      %v552 = vpop.f32.mrf.mxu0
      %v553 = vadd.f32 %v307, %v552
      %v554 = vpop.f32.mrf.mxu0
      %555 = vmatprep.mubr.f32.mxu0 0.0
      %556 = vmatmul.mubr.f32.gmra.mxu0 %v362
      %v557 = vpop.f32.mrf.mxu0
      %v558 = vadd.f32 %v307, %v557
      %v559 = vpop.f32.mrf.mxu0
      %560 = vmatprep.mubr.f32.mxu0 0.0
      %561 = vmatmul.mubr.f32.gmra.mxu0 %v365
      %v562 = vpop.f32.mrf.mxu0
      %v563 = vadd.f32 %v307, %v562
      %v564 = vpop.f32.mrf.mxu0
      %565 = vmatprep.mubr.f32.mxu0 0.0
      %566 = vmatmul.mubr.f32.gmra.mxu0 %v368
      %v567 = vpop.f32.mrf.mxu0
      %v568 = vadd.f32 %v307, %v567
      %v569 = vpop.f32.mrf.mxu0
      %570 = vmatprep.mubr.f32.mxu0 0.0
      %571 = vmatmul.mubr.f32.gmra.mxu0 %v371
      %v572 = vpop.f32.mrf.mxu0
      %v573 = vadd.f32 %v307, %v572
      %v574 = vpop.f32.mrf.mxu0
      %575 = vmatprep.mubr.f32.mxu0 0.0
      %576 = vmatmul.mubr.f32.gmra.mxu0 %v374
      %v577 = vpop.f32.mrf.mxu0
      %v578 = vadd.f32 %v307, %v577
      %v579 = vpop.f32.mrf.mxu0
      %580 = vmatprep.mubr.f32.mxu0 0.0
      %581 = vmatmul.mubr.f32.gmra.mxu0 %v377
      %v582 = vpop.f32.mrf.mxu0
      %v583 = vadd.f32 %v307, %v582
      %v584 = vpop.f32.mrf.mxu0
      %585 = vmatprep.mubr.f32.mxu0 0.0
      %586 = vmatmul.mubr.f32.gmra.mxu0 %v380
      %v587 = vpop.f32.mrf.mxu0
      %v588 = vadd.f32 %v307, %v587
      %v589 = vpop.f32.mrf.mxu0
      %590 = vmatprep.mubr.f32.mxu0 0.0
      %591 = vmatmul.mubr.f32.gmra.mxu0 %v383
      %v592 = vpop.f32.mrf.mxu0
      %v593 = vadd.f32 %v307, %v592
      %v594 = vpop.f32.mrf.mxu0
      %595 = vmatprep.mubr.f32.mxu0 0.0
      %596 = vmatmul.mubr.f32.gmra.mxu0 %v386
      %v597 = vpop.f32.mrf.mxu0
      %v598 = vadd.f32 %v307, %v597
      %v599 = vpop.f32.mrf.mxu0
      %600 = vmatprep.mubr.f32.mxu0 0.0
      %601 = vmatmul.mubr.f32.gmra.mxu0 %v389
      %v602 = vpop.f32.mrf.mxu0
      %v603 = vadd.f32 %v307, %v602
      %v604 = vpop.f32.mrf.mxu0
      %605 = vmatprep.mubr.f32.mxu0 0.0
      %606 = vmatmul.mubr.f32.gmra.mxu0 %v392
      %v607 = vpop.f32.mrf.mxu0
      %v608 = vadd.f32 %v307, %v607
      %v609 = vpop.f32.mrf.mxu0
      %610 = vmatprep.mubr.f32.mxu0 0.0
      %611 = vmatmul.mubr.f32.gmra.mxu0 %v395
      %v612 = vpop.f32.mrf.mxu0
      %v613 = vadd.f32 %v307, %v612
      %v614 = vpop.f32.mrf.mxu0
      %615 = vmatprep.mubr.f32.mxu0 0.0
      %616 = vmatmul.mubr.f32.gmra.mxu0 %v398
      %v617 = vpop.f32.mrf.mxu0
      %v618 = vadd.f32 %v307, %v617
      %v619 = vpop.f32.mrf.mxu0
      %620 = vmatprep.mubr.f32.mxu0 0.0
      %621 = vmatmul.mubr.f32.gmra.mxu0 %v401
      %v622 = vpop.f32.mrf.mxu0
      %v623 = vadd.f32 %v307, %v622
      %v624 = vpop.f32.mrf.mxu0
      %625 = vmatprep.mubr.f32.mxu0 0.0
      %626 = vmatmul.mubr.f32.gmra.mxu0 %v404
      %v627 = vpop.f32.mrf.mxu0
      %v628 = vadd.f32 %v307, %v627
      %v629 = vpop.f32.mrf.mxu0
      %630 = vdwg.mxu0
      %v631 = vsub.f32 0.0, %v473
      %v632 = vsub.f32 0.0, %v478
      %v633 = vsub.f32 0.0, %v483
      %v634 = vsub.f32 0.0, %v488
      %v635 = vsub.f32 0.0, %v493
      %v636 = vsub.f32 0.0, %v498
      %v637 = vsub.f32 0.0, %v503
      %v638 = vsub.f32 0.0, %v508
      %v639 = vsub.f32 0.0, %v513
      %v640 = vsub.f32 0.0, %v518
      %v641 = vsub.f32 0.0, %v523
      %v642 = vsub.f32 0.0, %v528
      %v643 = vsub.f32 0.0, %v533
      %v644 = vsub.f32 0.0, %v538
      %v645 = vsub.f32 0.0, %v543
      %v646 = vsub.f32 0.0, %v548
      %v647 = vsub.f32 0.0, %v553
      %v648 = vsub.f32 0.0, %v558
      %v649 = vsub.f32 0.0, %v563
      %v650 = vsub.f32 0.0, %v568
      %v651 = vsub.f32 0.0, %v573
      %v652 = vsub.f32 0.0, %v578
      %v653 = vsub.f32 0.0, %v583
      %v654 = vsub.f32 0.0, %v588
      %v655 = vsub.f32 0.0, %v593
      %v656 = vsub.f32 0.0, %v598
      %v657 = vsub.f32 0.0, %v603
      %v658 = vsub.f32 0.0, %v608
      %v659 = vsub.f32 0.0, %v613
      %v660 = vsub.f32 0.0, %v618
      %v661 = vsub.f32 0.0, %v623
      %v662 = vsub.f32 0.0, %v628
      %v663 = vmul.f32 %v631, 1.442695
      %v664 = vpow.pop %v663
      %v665 = vmul.f32 %v632, 1.442695
      %v666 = vpow.pop %v665
      %v667 = vmul.f32 %v633, 1.442695
      %v668 = vpow.pop %v667
      %v669 = vmul.f32 %v634, 1.442695
      %v670 = vpow.pop %v669
      %v671 = vmul.f32 %v635, 1.442695
      %v672 = vpow.pop %v671
      %v673 = vmul.f32 %v636, 1.442695
      %v674 = vpow.pop %v673
      %v675 = vmul.f32 %v637, 1.442695
      %v676 = vpow.pop %v675
      %v677 = vmul.f32 %v638, 1.442695
      %v678 = vpow.pop %v677
      %v679 = vmul.f32 %v639, 1.442695
      %v680 = vpow.pop %v679
      %v681 = vmul.f32 %v640, 1.442695
      %v682 = vpow.pop %v681
      %v683 = vmul.f32 %v641, 1.442695
      %v684 = vpow.pop %v683
      %v685 = vmul.f32 %v642, 1.442695
      %v686 = vpow.pop %v685
      %v687 = vmul.f32 %v643, 1.442695
      %v688 = vpow.pop %v687
      %v689 = vmul.f32 %v644, 1.442695
      %v690 = vpow.pop %v689
      %v691 = vmul.f32 %v645, 1.442695
      %v692 = vpow.pop %v691
      %v693 = vmul.f32 %v646, 1.442695
      %v694 = vpow.pop %v693
      %v695 = vmul.f32 %v647, 1.442695
      %v696 = vpow.pop %v695
      %v697 = vmul.f32 %v648, 1.442695
      %v698 = vpow.pop %v697
      %v699 = vmul.f32 %v649, 1.442695
      %v700 = vpow.pop %v699
      %v701 = vmul.f32 %v650, 1.442695
      %v702 = vpow.pop %v701
      %v703 = vmul.f32 %v651, 1.442695
      %v704 = vpow.pop %v703
      %v705 = vmul.f32 %v652, 1.442695
      %v706 = vpow.pop %v705
      %v707 = vmul.f32 %v653, 1.442695
      %v708 = vpow.pop %v707
      %v709 = vmul.f32 %v654, 1.442695
      %v710 = vpow.pop %v709
      %v711 = vmul.f32 %v655, 1.442695
      %v712 = vpow.pop %v711
      %v713 = vmul.f32 %v656, 1.442695
      %v714 = vpow.pop %v713
      %v715 = vmul.f32 %v657, 1.442695
      %v716 = vpow.pop %v715
      %v717 = vmul.f32 %v658, 1.442695
      %v718 = vpow.pop %v717
      %v719 = vmul.f32 %v659, 1.442695
      %v720 = vpow.pop %v719
      %v721 = vmul.f32 %v660, 1.442695
      %v722 = vpow.pop %v721
      %v723 = vmul.f32 %v661, 1.442695
      %v724 = vpow.pop %v723
      %v725 = vmul.f32 %v662, 1.442695
      %v726 = vpow.pop %v725
      %v727 = vadd.f32 %v664, 1.0
      %v728 = vadd.f32 %v666, 1.0
      %v729 = vadd.f32 %v668, 1.0
      %v730 = vadd.f32 %v670, 1.0
      %v731 = vadd.f32 %v672, 1.0
      %v732 = vadd.f32 %v674, 1.0
      %v733 = vadd.f32 %v676, 1.0
      %v734 = vadd.f32 %v678, 1.0
      %v735 = vadd.f32 %v680, 1.0
      %v736 = vadd.f32 %v682, 1.0
      %v737 = vadd.f32 %v684, 1.0
      %v738 = vadd.f32 %v686, 1.0
      %v739 = vadd.f32 %v688, 1.0
      %v740 = vadd.f32 %v690, 1.0
      %v741 = vadd.f32 %v692, 1.0
      %v742 = vadd.f32 %v694, 1.0
      %v743 = vadd.f32 %v696, 1.0
      %v744 = vadd.f32 %v698, 1.0
      %v745 = vadd.f32 %v700, 1.0
      %v746 = vadd.f32 %v702, 1.0
      %v747 = vadd.f32 %v704, 1.0
      %v748 = vadd.f32 %v706, 1.0
      %v749 = vadd.f32 %v708, 1.0
      %v750 = vadd.f32 %v710, 1.0
      %v751 = vadd.f32 %v712, 1.0
      %v752 = vadd.f32 %v714, 1.0
      %v753 = vadd.f32 %v716, 1.0
      %v754 = vadd.f32 %v718, 1.0
      %v755 = vadd.f32 %v720, 1.0
      %v756 = vadd.f32 %v722, 1.0
      %v757 = vadd.f32 %v724, 1.0
      %v758 = vadd.f32 %v726, 1.0
      %v759 = vrcp.pop %v727
      %v760 = vmul.f32 1.0, %v759
      %v761 = vrcp.pop %v728
      %v762 = vmul.f32 1.0, %v761
      %v763 = vrcp.pop %v729
      %v764 = vmul.f32 1.0, %v763
      %v765 = vrcp.pop %v730
      %v766 = vmul.f32 1.0, %v765
      %v767 = vrcp.pop %v731
      %v768 = vmul.f32 1.0, %v767
      %v769 = vrcp.pop %v732
      %v770 = vmul.f32 1.0, %v769
      %v771 = vrcp.pop %v733
      %v772 = vmul.f32 1.0, %v771
      %v773 = vrcp.pop %v734
      %v774 = vmul.f32 1.0, %v773
      %v775 = vrcp.pop %v735
      %v776 = vmul.f32 1.0, %v775
      %v777 = vrcp.pop %v736
      %v778 = vmul.f32 1.0, %v777
      %v779 = vrcp.pop %v737
      %v780 = vmul.f32 1.0, %v779
      %v781 = vrcp.pop %v738
      %v782 = vmul.f32 1.0, %v781
      %v783 = vrcp.pop %v739
      %v784 = vmul.f32 1.0, %v783
      %v785 = vrcp.pop %v740
      %v786 = vmul.f32 1.0, %v785
      %v787 = vrcp.pop %v741
      %v788 = vmul.f32 1.0, %v787
      %v789 = vrcp.pop %v742
      %v790 = vmul.f32 1.0, %v789
      %v791 = vrcp.pop %v743
      %v792 = vmul.f32 1.0, %v791
      %v793 = vrcp.pop %v744
      %v794 = vmul.f32 1.0, %v793
      %v795 = vrcp.pop %v745
      %v796 = vmul.f32 1.0, %v795
      %v797 = vrcp.pop %v746
      %v798 = vmul.f32 1.0, %v797
      %v799 = vrcp.pop %v747
      %v800 = vmul.f32 1.0, %v799
      %v801 = vrcp.pop %v748
      %v802 = vmul.f32 1.0, %v801
      %v803 = vrcp.pop %v749
      %v804 = vmul.f32 1.0, %v803
      %v805 = vrcp.pop %v750
      %v806 = vmul.f32 1.0, %v805
      %v807 = vrcp.pop %v751
      %v808 = vmul.f32 1.0, %v807
      %v809 = vrcp.pop %v752
      %v810 = vmul.f32 1.0, %v809
      %v811 = vrcp.pop %v753
      %v812 = vmul.f32 1.0, %v811
      %v813 = vrcp.pop %v754
      %v814 = vmul.f32 1.0, %v813
      %v815 = vrcp.pop %v755
      %v816 = vmul.f32 1.0, %v815
      %v817 = vrcp.pop %v756
      %v818 = vmul.f32 1.0, %v817
      %v819 = vrcp.pop %v757
      %v820 = vmul.f32 1.0, %v819
      %v821 = vrcp.pop %v758
      %v822 = vmul.f32 1.0, %v821
      %v823 = vmul.f32 %v473, %v760
      %v824 = vmul.f32 %v478, %v762
      %v825 = vmul.f32 %v483, %v764
      %v826 = vmul.f32 %v488, %v766
      %v827 = vmul.f32 %v493, %v768
      %v828 = vmul.f32 %v498, %v770
      %v829 = vmul.f32 %v503, %v772
      %v830 = vmul.f32 %v508, %v774
      %v831 = vmul.f32 %v513, %v776
      %v832 = vmul.f32 %v518, %v778
      %v833 = vmul.f32 %v523, %v780
      %v834 = vmul.f32 %v528, %v782
      %v835 = vmul.f32 %v533, %v784
      %v836 = vmul.f32 %v538, %v786
      %v837 = vmul.f32 %v543, %v788
      %v838 = vmul.f32 %v548, %v790
      %v839 = vmul.f32 %v553, %v792
      %v840 = vmul.f32 %v558, %v794
      %v841 = vmul.f32 %v563, %v796
      %v842 = vmul.f32 %v568, %v798
      %v843 = vmul.f32 %v573, %v800
      %v844 = vmul.f32 %v578, %v802
      %v845 = vmul.f32 %v583, %v804
      %v846 = vmul.f32 %v588, %v806
      %v847 = vmul.f32 %v593, %v808
      %v848 = vmul.f32 %v598, %v810
      %v849 = vmul.f32 %v603, %v812
      %v850 = vmul.f32 %v608, %v814
      %v851 = vmul.f32 %v613, %v816
      %v852 = vmul.f32 %v618, %v818
      %v853 = vmul.f32 %v623, %v820
      %v854 = vmul.f32 %v628, %v822
      %vm855 = vcmask 130048
      %856 = vst.msk [vmem:[%s261] sm:$0xff] %vm855, %v823
      %857 = vst.msk [vmem:[%s261 + $0x8] sm:$0xff] %vm855, %v824
      %858 = vst.msk [vmem:[%s261 + $0x10] sm:$0xff] %vm855, %v825
      %859 = vst.msk [vmem:[%s261 + $0x18] sm:$0xff] %vm855, %v826
      %860 = vst.msk [vmem:[%s261 + $0x20] sm:$0xff] %vm855, %v827
      %861 = vst.msk [vmem:[%s261 + $0x28] sm:$0xff] %vm855, %v828
      %862 = vst.msk [vmem:[%s261 + $0x30] sm:$0xff] %vm855, %v829
      %863 = vst.msk [vmem:[%s261 + $0x38] sm:$0xff] %vm855, %v830
      %864 = vst.msk [vmem:[%s261 + $0x40] sm:$0xff] %vm855, %v831
      %865 = vst.msk [vmem:[%s261 + $0x48] sm:$0xff] %vm855, %v832
      %866 = vst.msk [vmem:[%s261 + $0x50] sm:$0xff] %vm855, %v833
      %867 = vst.msk [vmem:[%s261 + $0x58] sm:$0xff] %vm855, %v834
      %868 = vst.msk [vmem:[%s261 + $0x60] sm:$0xff] %vm855, %v835
      %869 = vst.msk [vmem:[%s261 + $0x68] sm:$0xff] %vm855, %v836
      %870 = vst.msk [vmem:[%s261 + $0x70] sm:$0xff] %vm855, %v837
      %871 = vst.msk [vmem:[%s261 + $0x78] sm:$0xff] %vm855, %v838
      %872 = vst.msk [vmem:[%s261 + $0x80] sm:$0xff] %vm855, %v839
      %873 = vst.msk [vmem:[%s261 + $0x88] sm:$0xff] %vm855, %v840
      %874 = vst.msk [vmem:[%s261 + $0x90] sm:$0xff] %vm855, %v841
      %875 = vst.msk [vmem:[%s261 + $0x98] sm:$0xff] %vm855, %v842
      %876 = vst.msk [vmem:[%s261 + $0xa0] sm:$0xff] %vm855, %v843
      %877 = vst.msk [vmem:[%s261 + $0xa8] sm:$0xff] %vm855, %v844
      %878 = vst.msk [vmem:[%s261 + $0xb0] sm:$0xff] %vm855, %v845
      %879 = vst.msk [vmem:[%s261 + $0xb8] sm:$0xff] %vm855, %v846
      %880 = vst.msk [vmem:[%s261 + $0xc0] sm:$0xff] %vm855, %v847
      %881 = vst.msk [vmem:[%s261 + $0xc8] sm:$0xff] %vm855, %v848
      %882 = vst.msk [vmem:[%s261 + $0xd0] sm:$0xff] %vm855, %v849
      %883 = vst.msk [vmem:[%s261 + $0xd8] sm:$0xff] %vm855, %v850
      %884 = vst.msk [vmem:[%s261 + $0xe0] sm:$0xff] %vm855, %v851
      %885 = vst.msk [vmem:[%s261 + $0xe8] sm:$0xff] %vm855, %v852
      %886 = vst.msk [vmem:[%s261 + $0xf0] sm:$0xff] %vm855, %v853
      %887 = vst.msk [vmem:[%s261 + $0xf8] sm:$0xff] %vm855, %v854
      %v888 = vld [vmem:[%s3] sm:$0xff]
      %v889 = vld [vmem:[%s3 + $0x8] sm:$0xff]
      %v890 = vld [vmem:[%s4] sm:$0x1]
      %v892 = vlaneseq
      %v893 = vshrl.u32 %v892, 7
      %v894 = vsub.s32 0, %v893
      %v895 = vrot.slane %v890, %v894
      %v898 = vsel %vm855, %v823, 0
      %v901 = vsel %vm855, %v824, 0
      %v904 = vsel %vm855, %v825, 0
      %v907 = vsel %vm855, %v826, 0
      %v910 = vsel %vm855, %v827, 0
      %v913 = vsel %vm855, %v828, 0
      %v916 = vsel %vm855, %v829, 0
      %v919 = vsel %vm855, %v830, 0
      %v922 = vsel %vm855, %v831, 0
      %v925 = vsel %vm855, %v832, 0
      %v928 = vsel %vm855, %v833, 0
      %v931 = vsel %vm855, %v834, 0
      %v934 = vsel %vm855, %v835, 0
      %v937 = vsel %vm855, %v836, 0
      %v940 = vsel %vm855, %v837, 0
      %v943 = vsel %vm855, %v838, 0
      %v946 = vsel %vm855, %v839, 0
      %v949 = vsel %vm855, %v840, 0
      %v952 = vsel %vm855, %v841, 0
      %v955 = vsel %vm855, %v842, 0
      %v958 = vsel %vm855, %v843, 0
      %v961 = vsel %vm855, %v844, 0
      %v964 = vsel %vm855, %v845, 0
      %v967 = vsel %vm855, %v846, 0
      %v970 = vsel %vm855, %v847, 0
      %v973 = vsel %vm855, %v848, 0
      %v976 = vsel %vm855, %v849, 0
      %v979 = vsel %vm855, %v850, 0
      %v982 = vsel %vm855, %v851, 0
      %v985 = vsel %vm855, %v852, 0
      %v988 = vsel %vm855, %v853, 0
      %v991 = vsel %vm855, %v854, 0
      %993 = vmatprep.subr.mxu0 0.0
      %994 = vmatpush1.msra.mxu0 0.0
      %995 = vmatprep.subr.mxu0 0.0
      %996 = vmatpush1.msra.mxu0 0.0
      %997 = vmatprep.subr.mxu0 0.0
      %998 = vmatpush1.msra.mxu0 0.0
      %999 = vmatprep.subr.mxu0 0.0
      %1000 = vmatpush1.msra.mxu0 0.0
      %1001 = vmatprep.subr.mxu0 0.0
      %1002 = vmatpush1.msra.mxu0 0.0
      %1003 = vmatprep.subr.mxu0 0.0
      %1004 = vmatpush1.msra.mxu0 0.0
      %1005 = vmatprep.subr.mxu0 0.0
      %1006 = vmatpush1.msra.mxu0 0.0
      %1007 = vmatprep.subr.mxu0 0.0
      %1008 = vmatpush1.msra.mxu0 0.0
      %1009 = vmatprep.subr.mxu0 0.0
      %1010 = vmatpush1.msra.mxu0 0.0
      %1011 = vmatprep.subr.mxu0 0.0
      %1012 = vmatpush1.msra.mxu0 0.0
      %1013 = vmatprep.subr.mxu0 0.0
      %1014 = vmatpush1.msra.mxu0 0.0
      %1015 = vmatprep.subr.mxu0 0.0
      %1016 = vmatpush1.msra.mxu0 0.0
      %1017 = vmatprep.subr.mxu0 0.0
      %1018 = vmatpush1.msra.mxu0 0.0
      %1019 = vmatprep.subr.mxu0 0.0
      %1020 = vmatpush1.msra.mxu0 0.0
      %1021 = vmatprep.subr.mxu0 0.0
      %1022 = vmatpush1.msra.mxu0 %v889
      %1023 = vmatprep.subr.mxu0 0.0
      %1024 = vmatpush1.msra.mxu0 %v888
      %1025 = vmatprep.subr.mxu0 0.0
      %1026 = vmatpush2.msra.mxu0 0.0
      %1027 = vmatprep.subr.mxu0 0.0
      %1028 = vmatpush2.msra.mxu0 0.0
      %1029 = vmatprep.subr.mxu0 0.0
      %1030 = vmatpush2.msra.mxu0 0.0
      %1031 = vmatprep.subr.mxu0 0.0
      %1032 = vmatpush2.msra.mxu0 0.0
      %1033 = vmatprep.subr.mxu0 0.0
      %1034 = vmatpush2.msra.mxu0 0.0
      %1035 = vmatprep.subr.mxu0 0.0
      %1036 = vmatpush2.msra.mxu0 0.0
      %1037 = vmatprep.subr.mxu0 0.0
      %1038 = vmatpush2.msra.mxu0 0.0
      %1039 = vmatprep.subr.mxu0 0.0
      %1040 = vmatpush2.msra.mxu0 0.0
      %1041 = vmatprep.subr.mxu0 0.0
      %1042 = vmatpush2.msra.mxu0 0.0
      %1043 = vmatprep.subr.mxu0 0.0
      %1044 = vmatpush2.msra.mxu0 0.0
      %1045 = vmatprep.subr.mxu0 0.0
      %1046 = vmatpush2.msra.mxu0 0.0
      %1047 = vmatprep.subr.mxu0 0.0
      %1048 = vmatpush2.msra.mxu0 0.0
      %1049 = vmatprep.subr.mxu0 0.0
      %1050 = vmatpush2.msra.mxu0 0.0
      %1051 = vmatprep.subr.mxu0 0.0
      %1052 = vmatpush2.msra.mxu0 0.0
      %1053 = vmatprep.subr.mxu0 0.0
      %1054 = vmatpush2.msra.mxu0 0.0
      %1055 = vmatprep.subr.mxu0 0.0
      %1056 = vmatpush2.msra.mxu0 0.0
      %1057 = vmatprep.mubr.f32.mxu0 0.0
      %1058 = vmatmul.mubr.f32.gmra.mxu0 %v898
      %v1059 = vpop.f32.mrf.mxu0
      %v1060 = vadd.f32 %v895, %v1059
      %v1061 = vpop.f32.mrf.mxu0
      %1062 = vmatprep.mubr.f32.mxu0 0.0
      %1063 = vmatmul.mubr.f32.gmra.mxu0 %v901
      %v1064 = vpop.f32.mrf.mxu0
      %v1065 = vadd.f32 %v895, %v1064
      %v1066 = vpop.f32.mrf.mxu0
      %1067 = vmatprep.mubr.f32.mxu0 0.0
      %1068 = vmatmul.mubr.f32.gmra.mxu0 %v904
      %v1069 = vpop.f32.mrf.mxu0
      %v1070 = vadd.f32 %v895, %v1069
      %v1071 = vpop.f32.mrf.mxu0
      %1072 = vmatprep.mubr.f32.mxu0 0.0
      %1073 = vmatmul.mubr.f32.gmra.mxu0 %v907
      %v1074 = vpop.f32.mrf.mxu0
      %v1075 = vadd.f32 %v895, %v1074
      %v1076 = vpop.f32.mrf.mxu0
      %1077 = vmatprep.mubr.f32.mxu0 0.0
      %1078 = vmatmul.mubr.f32.gmra.mxu0 %v910
      %v1079 = vpop.f32.mrf.mxu0
      %v1080 = vadd.f32 %v895, %v1079
      %v1081 = vpop.f32.mrf.mxu0
      %1082 = vmatprep.mubr.f32.mxu0 0.0
      %1083 = vmatmul.mubr.f32.gmra.mxu0 %v913
      %v1084 = vpop.f32.mrf.mxu0
      %v1085 = vadd.f32 %v895, %v1084
      %v1086 = vpop.f32.mrf.mxu0
      %1087 = vmatprep.mubr.f32.mxu0 0.0
      %1088 = vmatmul.mubr.f32.gmra.mxu0 %v916
      %v1089 = vpop.f32.mrf.mxu0
      %v1090 = vadd.f32 %v895, %v1089
      %v1091 = vpop.f32.mrf.mxu0
      %1092 = vmatprep.mubr.f32.mxu0 0.0
      %1093 = vmatmul.mubr.f32.gmra.mxu0 %v919
      %v1094 = vpop.f32.mrf.mxu0
      %v1095 = vadd.f32 %v895, %v1094
      %v1096 = vpop.f32.mrf.mxu0
      %1097 = vmatprep.mubr.f32.mxu0 0.0
      %1098 = vmatmul.mubr.f32.gmra.mxu0 %v922
      %v1099 = vpop.f32.mrf.mxu0
      %v1100 = vadd.f32 %v895, %v1099
      %v1101 = vpop.f32.mrf.mxu0
      %1102 = vmatprep.mubr.f32.mxu0 0.0
      %1103 = vmatmul.mubr.f32.gmra.mxu0 %v925
      %v1104 = vpop.f32.mrf.mxu0
      %v1105 = vadd.f32 %v895, %v1104
      %v1106 = vpop.f32.mrf.mxu0
      %1107 = vmatprep.mubr.f32.mxu0 0.0
      %1108 = vmatmul.mubr.f32.gmra.mxu0 %v928
      %v1109 = vpop.f32.mrf.mxu0
      %v1110 = vadd.f32 %v895, %v1109
      %v1111 = vpop.f32.mrf.mxu0
      %1112 = vmatprep.mubr.f32.mxu0 0.0
      %1113 = vmatmul.mubr.f32.gmra.mxu0 %v931
      %v1114 = vpop.f32.mrf.mxu0
      %v1115 = vadd.f32 %v895, %v1114
      %v1116 = vpop.f32.mrf.mxu0
      %1117 = vmatprep.mubr.f32.mxu0 0.0
      %1118 = vmatmul.mubr.f32.gmra.mxu0 %v934
      %v1119 = vpop.f32.mrf.mxu0
      %v1120 = vadd.f32 %v895, %v1119
      %v1121 = vpop.f32.mrf.mxu0
      %1122 = vmatprep.mubr.f32.mxu0 0.0
      %1123 = vmatmul.mubr.f32.gmra.mxu0 %v937
      %v1124 = vpop.f32.mrf.mxu0
      %v1125 = vadd.f32 %v895, %v1124
      %v1126 = vpop.f32.mrf.mxu0
      %1127 = vmatprep.mubr.f32.mxu0 0.0
      %1128 = vmatmul.mubr.f32.gmra.mxu0 %v940
      %v1129 = vpop.f32.mrf.mxu0
      %v1130 = vadd.f32 %v895, %v1129
      %v1131 = vpop.f32.mrf.mxu0
      %1132 = vmatprep.mubr.f32.mxu0 0.0
      %1133 = vmatmul.mubr.f32.gmra.mxu0 %v943
      %v1134 = vpop.f32.mrf.mxu0
      %v1135 = vadd.f32 %v895, %v1134
      %v1136 = vpop.f32.mrf.mxu0
      %1137 = vmatprep.mubr.f32.mxu0 0.0
      %1138 = vmatmul.mubr.f32.gmra.mxu0 %v946
      %v1139 = vpop.f32.mrf.mxu0
      %v1140 = vadd.f32 %v895, %v1139
      %v1141 = vpop.f32.mrf.mxu0
      %1142 = vmatprep.mubr.f32.mxu0 0.0
      %1143 = vmatmul.mubr.f32.gmra.mxu0 %v949
      %v1144 = vpop.f32.mrf.mxu0
      %v1145 = vadd.f32 %v895, %v1144
      %v1146 = vpop.f32.mrf.mxu0
      %1147 = vmatprep.mubr.f32.mxu0 0.0
      %1148 = vmatmul.mubr.f32.gmra.mxu0 %v952
      %v1149 = vpop.f32.mrf.mxu0
      %v1150 = vadd.f32 %v895, %v1149
      %v1151 = vpop.f32.mrf.mxu0
      %1152 = vmatprep.mubr.f32.mxu0 0.0
      %1153 = vmatmul.mubr.f32.gmra.mxu0 %v955
      %v1154 = vpop.f32.mrf.mxu0
      %v1155 = vadd.f32 %v895, %v1154
      %v1156 = vpop.f32.mrf.mxu0
      %1157 = vmatprep.mubr.f32.mxu0 0.0
      %1158 = vmatmul.mubr.f32.gmra.mxu0 %v958
      %v1159 = vpop.f32.mrf.mxu0
      %v1160 = vadd.f32 %v895, %v1159
      %v1161 = vpop.f32.mrf.mxu0
      %1162 = vmatprep.mubr.f32.mxu0 0.0
      %1163 = vmatmul.mubr.f32.gmra.mxu0 %v961
      %v1164 = vpop.f32.mrf.mxu0
      %v1165 = vadd.f32 %v895, %v1164
      %v1166 = vpop.f32.mrf.mxu0
      %1167 = vmatprep.mubr.f32.mxu0 0.0
      %1168 = vmatmul.mubr.f32.gmra.mxu0 %v964
      %v1169 = vpop.f32.mrf.mxu0
      %v1170 = vadd.f32 %v895, %v1169
      %v1171 = vpop.f32.mrf.mxu0
      %1172 = vmatprep.mubr.f32.mxu0 0.0
      %1173 = vmatmul.mubr.f32.gmra.mxu0 %v967
      %v1174 = vpop.f32.mrf.mxu0
      %v1175 = vadd.f32 %v895, %v1174
      %v1176 = vpop.f32.mrf.mxu0
      %1177 = vmatprep.mubr.f32.mxu0 0.0
      %1178 = vmatmul.mubr.f32.gmra.mxu0 %v970
      %v1179 = vpop.f32.mrf.mxu0
      %v1180 = vadd.f32 %v895, %v1179
      %v1181 = vpop.f32.mrf.mxu0
      %1182 = vmatprep.mubr.f32.mxu0 0.0
      %1183 = vmatmul.mubr.f32.gmra.mxu0 %v973
      %v1184 = vpop.f32.mrf.mxu0
      %v1185 = vadd.f32 %v895, %v1184
      %v1186 = vpop.f32.mrf.mxu0
      %1187 = vmatprep.mubr.f32.mxu0 0.0
      %1188 = vmatmul.mubr.f32.gmra.mxu0 %v976
      %v1189 = vpop.f32.mrf.mxu0
      %v1190 = vadd.f32 %v895, %v1189
      %v1191 = vpop.f32.mrf.mxu0
      %1192 = vmatprep.mubr.f32.mxu0 0.0
      %1193 = vmatmul.mubr.f32.gmra.mxu0 %v979
      %v1194 = vpop.f32.mrf.mxu0
      %v1195 = vadd.f32 %v895, %v1194
      %v1196 = vpop.f32.mrf.mxu0
      %1197 = vmatprep.mubr.f32.mxu0 0.0
      %1198 = vmatmul.mubr.f32.gmra.mxu0 %v982
      %v1199 = vpop.f32.mrf.mxu0
      %v1200 = vadd.f32 %v895, %v1199
      %v1201 = vpop.f32.mrf.mxu0
      %1202 = vmatprep.mubr.f32.mxu0 0.0
      %1203 = vmatmul.mubr.f32.gmra.mxu0 %v985
      %v1204 = vpop.f32.mrf.mxu0
      %v1205 = vadd.f32 %v895, %v1204
      %v1206 = vpop.f32.mrf.mxu0
      %1207 = vmatprep.mubr.f32.mxu0 0.0
      %1208 = vmatmul.mubr.f32.gmra.mxu0 %v988
      %v1209 = vpop.f32.mrf.mxu0
      %v1210 = vadd.f32 %v895, %v1209
      %v1211 = vpop.f32.mrf.mxu0
      %1212 = vmatprep.mubr.f32.mxu0 0.0
      %1213 = vmatmul.mubr.f32.gmra.mxu0 %v991
      %v1214 = vpop.f32.mrf.mxu0
      %v1215 = vadd.f32 %v895, %v1214
      %v1216 = vpop.f32.mrf.mxu0
      %1217 = vdwg.mxu0
      %1218 = vst.msk [vmem:[%s267] sm:$0xff] %vm855, %v1060
      %1219 = vst.msk [vmem:[%s267 + $0x8] sm:$0xff] %vm855, %v1065
      %1220 = vst.msk [vmem:[%s267 + $0x10] sm:$0xff] %vm855, %v1070
      %1221 = vst.msk [vmem:[%s267 + $0x18] sm:$0xff] %vm855, %v1075
      %1222 = vst.msk [vmem:[%s267 + $0x20] sm:$0xff] %vm855, %v1080
      %1223 = vst.msk [vmem:[%s267 + $0x28] sm:$0xff] %vm855, %v1085
      %1224 = vst.msk [vmem:[%s267 + $0x30] sm:$0xff] %vm855, %v1090
      %1225 = vst.msk [vmem:[%s267 + $0x38] sm:$0xff] %vm855, %v1095
      %1226 = vst.msk [vmem:[%s267 + $0x40] sm:$0xff] %vm855, %v1100
      %1227 = vst.msk [vmem:[%s267 + $0x48] sm:$0xff] %vm855, %v1105
      %1228 = vst.msk [vmem:[%s267 + $0x50] sm:$0xff] %vm855, %v1110
      %1229 = vst.msk [vmem:[%s267 + $0x58] sm:$0xff] %vm855, %v1115
      %1230 = vst.msk [vmem:[%s267 + $0x60] sm:$0xff] %vm855, %v1120
      %1231 = vst.msk [vmem:[%s267 + $0x68] sm:$0xff] %vm855, %v1125
      %1232 = vst.msk [vmem:[%s267 + $0x70] sm:$0xff] %vm855, %v1130
      %1233 = vst.msk [vmem:[%s267 + $0x78] sm:$0xff] %vm855, %v1135
      %1234 = vst.msk [vmem:[%s267 + $0x80] sm:$0xff] %vm855, %v1140
      %1235 = vst.msk [vmem:[%s267 + $0x88] sm:$0xff] %vm855, %v1145
      %1236 = vst.msk [vmem:[%s267 + $0x90] sm:$0xff] %vm855, %v1150
      %1237 = vst.msk [vmem:[%s267 + $0x98] sm:$0xff] %vm855, %v1155
      %1238 = vst.msk [vmem:[%s267 + $0xa0] sm:$0xff] %vm855, %v1160
      %1239 = vst.msk [vmem:[%s267 + $0xa8] sm:$0xff] %vm855, %v1165
      %1240 = vst.msk [vmem:[%s267 + $0xb0] sm:$0xff] %vm855, %v1170
      %1241 = vst.msk [vmem:[%s267 + $0xb8] sm:$0xff] %vm855, %v1175
      %1242 = vst.msk [vmem:[%s267 + $0xc0] sm:$0xff] %vm855, %v1180
      %1243 = vst.msk [vmem:[%s267 + $0xc8] sm:$0xff] %vm855, %v1185
      %1244 = vst.msk [vmem:[%s267 + $0xd0] sm:$0xff] %vm855, %v1190
      %1245 = vst.msk [vmem:[%s267 + $0xd8] sm:$0xff] %vm855, %v1195
      %1246 = vst.msk [vmem:[%s267 + $0xe0] sm:$0xff] %vm855, %v1200
      %1247 = vst.msk [vmem:[%s267 + $0xe8] sm:$0xff] %vm855, %v1205
      %1248 = vst.msk [vmem:[%s267 + $0xf0] sm:$0xff] %vm855, %v1210
      %1249 = vst.msk [vmem:[%s267 + $0xf8] sm:$0xff] %vm855, %v1215
      %s1250 = smul.u32 32, %s18
      %p1251 = scmp.lt.s32.totalorder %s1250, 63
      %s1252 = scalar_select %p1251, %s1250, 63
      %s1253 = smul.addr %s1252, 8
      %s1254 = scalar_lea.vmem %s5, %s1253
      %s1255 = smul.u32 32, %s18
      %p1256 = scmp.lt.s32.totalorder %s1255, 63
      %s1257 = scalar_select %p1256, %s1255, 63
      %s1258 = smul.addr %s1257, 8
      %s1259 = scalar_lea.vmem %s6, %s1258
      // Predicated region
      $region41: #{tpu_custom_call.1} parent=39 // pred_check
        %p1260 = pneg %p146
      $region42: #{tpu_custom_call.1} parent=39 // pred_check_branch
        %1262 = sbr.rel (%p1260) target = $region44
      $region43: #{tpu_custom_call.1} parent=39 // pred_region
        %s1263 = smul.u32 32, %s18
      $region44: #{tpu_custom_call.1} parent=39 // pred_fallthru
        _
      // Predicated region
      $region45: #{tpu_custom_call.1} parent=39 // pred_check
        %p1264 = pneg %p172
      $region46: #{tpu_custom_call.1} parent=39 // pred_check_branch
        %1266 = sbr.rel (%p1264) target = $region48
      $region47: #{tpu_custom_call.1} parent=39 // pred_region
        %s1267 = smul.u32 32, %s18
      $region48: #{tpu_custom_call.1} parent=39 // pred_fallthru
        _
    $region40: #{tpu_custom_call.1} parent=5 // pred_fallthru
      _
    %p1268 = scmp.le.s32.totalorder 2, %s13
    // Predicated region
    $region49: #{tpu_custom_call.1} parent=5 // pred_check
      %p1269 = pneg %p1268
    $region50: #{tpu_custom_call.1} parent=5 // pred_check_branch
      %1271 = sbr.rel (%p1269) target = $region52
    $region51: #{tpu_custom_call.1} parent=5 // pred_region
      %s1272 = ssub.s32 %s13, 2
      // Predicated region
      $region53: #{tpu_custom_call.1} parent=51 // pred_check
        %p1273 = pneg %p152
      $region54: #{tpu_custom_call.1} parent=51 // pred_check_branch
        %1275 = sbr.rel (%p1273) target = $region56
      $region55: #{tpu_custom_call.1} parent=51 // pred_region
        %s1276 = smul.u32 32, %s19
        %p1277 = scmp.lt.s32.totalorder %s1276, 63
        %s1278 = scalar_select %p1277, %s1276, 63
        %s1279 = smul.addr %s1278, 8
        %s1280 = scalar_lea.vmem %s5, %s1279
      $region56: #{tpu_custom_call.1} parent=51 // pred_fallthru
        _
      // Predicated region
      $region57: #{tpu_custom_call.1} parent=51 // pred_check
        %p1281 = pneg %p178
      $region58: #{tpu_custom_call.1} parent=51 // pred_check_branch
        %1283 = sbr.rel (%p1281) target = $region60
      $region59: #{tpu_custom_call.1} parent=51 // pred_region
        %s1284 = smul.u32 32, %s19
        %p1285 = scmp.lt.s32.totalorder %s1284, 63
        %s1286 = scalar_select %p1285, %s1284, 63
        %s1287 = smul.addr %s1286, 8
        %s1288 = scalar_lea.vmem %s6, %s1287
      $region60: #{tpu_custom_call.1} parent=51 // pred_fallthru
        _
    $region52: #{tpu_custom_call.1} parent=5 // pred_fallthru
      _
  $region6: #{tpu_custom_call.1} parent=0 // loop_footer
    %s17 = sadd.s32 1, %s13
  $region7: #{tpu_custom_call.1} parent=0 // loop_footer_branch
    %12 = sbr.rel target = $region3
  $region8: #{tpu_custom_call.1} parent=0 // loop_exit
    _

</llo_original>
